<compile_context>
chip_gen: v6e
topology: v6e:2x2x1
jax: 0.10.0
libtpu: 0.0.40
codegen_flags: <defaults>
</compile_context>

<pallas_src>
import jax
import jax.numpy as jnp
from jax import lax
from jax.experimental import pallas as pl
from jax.experimental.pallas import tpu as pltpu


def _round_up(a: int, m: int) -> int:
    return ((a + m - 1) // m) * m


def _upfd_kernel(gmin_ref, gmax_ref,                      # scalar-prefetch (SMEM)
                 a_ref, xw_ref, dinv_ref, gid_ref, xnews_ref,
                 bc_ref, w0_ref, b0_ref, w1a_ref, w1b_ref, b1_ref, w2_ref, b2_ref,
                 out_ref, h_ref, pool_ref):
    f32 = jnp.float32
    i = pl.program_id(0)           # node (row) tile
    k = pl.program_id(1)           # node (contraction) tile
    nm = pl.num_programs(0)
    nk = pl.num_programs(1)

    # --- one-time init of the running max-pool accumulator ---
    @pl.when(jnp.logical_and(i == 0, k == 0))
    def _():
        pool_ref[...] = jnp.full(pool_ref.shape, -1e30, dtype=f32)

    # --- per-row-tile init of the matmul accumulator ---
    @pl.when(k == 0)
    def _():
        h_ref[...] = jnp.zeros_like(h_ref)

    # --- GCNConv partial product: A tile (0/1, exact bf16) @ XW tile (bf16), f32 acc ---
    h_ref[...] += jnp.dot(a_ref[...], xw_ref[...], preferred_element_type=f32)

    # --- last K step: finish the row tile and fold it into the max pool ---
    @pl.when(k == nk - 1)
    def _():
        # row scale by d^-1/2 (f32), conv bias, ReLU
        h = jnp.maximum(dinv_ref[...] * h_ref[...] + bc_ref[...], 0.0)   # [tm, Hp] f32
        gid = gid_ref[...]                                               # [tm, 1] i32
        gp = pool_ref.shape[0]
        g_iota = lax.broadcasted_iota(jnp.int32, (gp, 1), 0)

        # loop only over graphs present in this node tile ([gmin, gmax] via SMEM).
        # Does not require `batch` to be sorted -- just covers the present graph ids.
        def body(g, carry):
            row = jnp.max(jnp.where(gid == g, h, -1e30),
                          axis=0, keepdims=True)                          # [1, Hp]
            pool_ref[...] = jnp.maximum(pool_ref[...],
                                        jnp.where(g_iota == g, row, -1e30))
            return carry

        lax.fori_loop(gmin_ref[i], gmax_ref[i] + 1, body, 0)

    # --- epilogue at the very last grid step: news branch, lin1, lin2, log-softmax ---
    @pl.when(jnp.logical_and(i == nm - 1, k == nk - 1))
    def _():
        pooled = pool_ref[...]
        # padding graph rows stay at -1e30; clamp so downstream math is finite
        pooled = jnp.where(pooled < -1e29, 0.0, pooled)

        news = jnp.dot(xnews_ref[...], w0_ref[...],
                       preferred_element_type=f32) + b0_ref[...]
        news = jnp.maximum(news, 0.0)

        # lin1 over cat([pooled, news]); w1a acts on the pooled half, w1b on news.
        z = (jnp.dot(pooled.astype(jnp.bfloat16), w1a_ref[...],
                     preferred_element_type=f32)
             + jnp.dot(news.astype(jnp.bfloat16), w1b_ref[...],
                       preferred_element_type=f32)
             + b1_ref[...])
        z = jnp.maximum(z, 0.0)

        logits = jnp.dot(z.astype(jnp.bfloat16), w2_ref[...],
                         preferred_element_type=f32) + b2_ref[...]
        m = jnp.max(logits, axis=-1, keepdims=True)
        lse = m + jnp.log(jnp.sum(jnp.exp(logits - m), axis=-1, keepdims=True))
        out_ref[...] = logits - lse


def upfd_forward(x, edge_index, batch, num_graphs, params, *,
                 tile_m=512, tile_k=1024):
    """Pallas-backed UPFDNet forward (gcn conv, concat=True)."""
    N, in_dim = x.shape
    hidden = params["wc"].shape[1]
    out_dim = params["w2"].shape[1]
    G = int(num_graphs)

    # Lane / sublane padding: 128-lane feature dims, 8-sublane graph dim,
    # 16-sublane node row tiles (bf16 packing), 128-lane contraction tiles.
    Dp = _round_up(in_dim, 128)
    Hp = _round_up(hidden, 128)
    Op = _round_up(out_dim, 128)
    Gp = _round_up(G, 8)
    tm = _round_up(min(int(tile_m), _round_up(N, 16)), 16)
    tk = _round_up(min(int(tile_k), _round_up(N, 128)), 128)
    Nm = _round_up(N, tm)        # padded row (destination-node) extent
    Nk = _round_up(N, tk)        # padded column (source-node / contraction) extent
    n_m, n_k = Nm // tm, Nk // tk

    src = edge_index[0].astype(jnp.int32)
    dst = edge_index[1].astype(jnp.int32)
    batch = batch.astype(jnp.int32)

    # --- adjacency (A + I) built in ONE pass, directly in bf16 (0/1 is exact) ---
    diag = jnp.arange(N, dtype=jnp.int32)
    rows = jnp.concatenate([dst, diag])
    cols = jnp.concatenate([src, diag])
    A_p = jnp.zeros((Nm, Nk), jnp.bfloat16).at[rows, cols].set(1.0)

    # --- symmetric normalization pulled out of A (O(E), stays f32) ---
    deg = jnp.ones((N,), jnp.float32).at[dst].add(1.0)     # self-loop + in-degree
    dinv = lax.rsqrt(deg)

    # --- XW = X @ Wc outside the kernel (f32), column d^-1/2 folded in f32 ---
    xw = (x.astype(jnp.float32) @ params["wc"]) * dinv[:, None]
    xw_p = (jnp.zeros((Nk, Hp), jnp.float32)
            .at[:N, :hidden].set(xw).astype(jnp.bfloat16))

    dinv_p = jnp.zeros((Nm, 1), jnp.float32).at[:N, 0].set(dinv)
    gid_p = jnp.full((Nm, 1), -1, jnp.int32).at[:N, 0].set(batch)

    # --- per-tile graph-id range for the segment-style pooling loop (SMEM prefetch) ---
    bt = jnp.full((Nm,), -1, jnp.int32).at[:N].set(batch).reshape(n_m, tm)
    valid = bt >= 0
    tile_gmax = jnp.max(jnp.where(valid, bt, -1), axis=1).astype(jnp.int32)
    tile_gmin = jnp.min(jnp.where(valid, bt, jnp.int32(2 ** 30)), axis=1).astype(jnp.int32)
    tile_gmin = jnp.where(tile_gmax < 0, 1, tile_gmin)     # empty tile -> empty loop
    tile_gmax = jnp.where(tile_gmax < 0, 0, tile_gmax)

    # --- first ("news") node of each graph; same as torch (batch == g).nonzero()[0] ---
    member = batch[:, None] == jnp.arange(G, dtype=jnp.int32)[None, :]
    first_idx = jnp.argmax(member, axis=0)
    x_news = (jnp.zeros((Gp, Dp), jnp.float32)
              .at[:G, :in_dim].set(x[first_idx]).astype(jnp.bfloat16))

    def pad2(w, r, c):
        return jnp.zeros((r, c), jnp.float32).at[:w.shape[0], :w.shape[1]].set(w)

    bc = pad2(params["bc"], 1, Hp)
    w0 = pad2(params["w0"], Dp, Hp).astype(jnp.bfloat16)
    b0 = pad2(params["b0"], 1, Hp)
    w1a = pad2(params["w1a"], Hp, Hp).astype(jnp.bfloat16)
    w1b = pad2(params["w1b"], Hp, Hp).astype(jnp.bfloat16)
    b1 = pad2(params["b1"], 1, Hp)
    w2 = pad2(params["w2"], Hp, Op).astype(jnp.bfloat16)
    # padded logit lanes get a -1e9 bias so they never affect the softmax normalizer
    b2 = jnp.full((1, Op), -1e9, jnp.float32).at[:, :out_dim].set(params["b2"])

    in_specs = [
        pl.BlockSpec((tm, tk), lambda i, k, gn, gx: (i, k)),   # A tile (bf16, streamed)
        pl.BlockSpec((tk, Hp), lambda i, k, gn, gx: (k, 0)),   # XW tile (bf16, streamed)
        pl.BlockSpec((tm, 1), lambda i, k, gn, gx: (i, 0)),    # d^-1/2 row scale (f32)
        pl.BlockSpec((tm, 1), lambda i, k, gn, gx: (i, 0)),    # per-node graph id (i32)
        pl.BlockSpec((Gp, Dp), lambda i, k, gn, gx: (0, 0)),   # news node features
        pl.BlockSpec((1, Hp), lambda i, k, gn, gx: (0, 0)),    # bc
        pl.BlockSpec((Dp, Hp), lambda i, k, gn, gx: (0, 0)),   # W0
        pl.BlockSpec((1, Hp), lambda i, k, gn, gx: (0, 0)),    # b0
        pl.BlockSpec((Hp, Hp), lambda i, k, gn, gx: (0, 0)),   # W1a (pooled half)
        pl.BlockSpec((Hp, Hp), lambda i, k, gn, gx: (0, 0)),   # W1b (news half)
        pl.BlockSpec((1, Hp), lambda i, k, gn, gx: (0, 0)),    # b1
        pl.BlockSpec((Hp, Op), lambda i, k, gn, gx: (0, 0)),   # W2
        pl.BlockSpec((1, Op), lambda i, k, gn, gx: (0, 0)),    # b2
    ]

    scratch_shapes = [
        pltpu.VMEM((tm, Hp), jnp.float32),   # h accumulator across K
        pltpu.VMEM((Gp, Hp), jnp.float32),   # running max-pool accumulator
    ]

    # VMEM budget: double-buffered streamed tiles + resident weights + scratch,
    # capped safely below physical capacity (v5e/v6e 128 MiB, v7x 64 MiB per TC).
    weights_bytes = (Gp * Dp * 2 + (Dp * Hp + 2 * Hp * Hp + Hp * Op) * 2
                     + (3 * Hp + Op) * 4)
    stream_bytes = 2 * (tm * tk * 2 + tk * Hp * 2 + 2 * tm * 4)
    scratch_bytes = (tm + Gp) * Hp * 4 + Gp * Op * 4
    need = stream_bytes + weights_bytes + scratch_bytes
    try:
        cap = int(getattr(pltpu.get_tpu_info(), "vmem_capacity_bytes", 64 << 20))
    except Exception:
        cap = 64 << 20
    vmem_limit = int(min(max(2 * need + (8 << 20), 32 << 20), (cap * 3) // 4))

    out_p = pl.pallas_call(
        _upfd_kernel,
        out_shape=jax.ShapeDtypeStruct((Gp, Op), jnp.float32),
        grid_spec=pltpu.PrefetchScalarGridSpec(
            num_scalar_prefetch=2,
            grid=(n_m, n_k),
            in_specs=in_specs,
            out_specs=pl.BlockSpec((Gp, Op), lambda i, k, gn, gx: (0, 0)),
            scratch_shapes=scratch_shapes),
        compiler_params=pltpu.CompilerParams(
            dimension_semantics=("arbitrary", "arbitrary"),  # both axes are reductions
            vmem_limit_bytes=vmem_limit),
    )(tile_gmin, tile_gmax, A_p, xw_p, dinv_p, gid_p, x_news,
      bc, w0, b0, w1a, w1b, b1, w2, b2)

    return out_p[:G, :out_dim]


def _reference_forward(x, edge_index, batch, num_graphs, params):
    """Plain-JAX reference (mirrors the kernel's bf16 matmul-operand storage)."""
    N, _ = x.shape
    G = num_graphs
    src, dst = edge_index[0], edge_index[1]
    A = jnp.zeros((N, N), jnp.float32).at[dst, src].set(1.0)
    A_hat = A + jnp.eye(N, dtype=jnp.float32)
    deg = jnp.ones((N,), jnp.float32).at[dst].add(1.0)
    dinv = lax.rsqrt(deg)

    bf = lambda a: a.astype(jnp.bfloat16).astype(jnp.float32)

    xw = bf((x @ params["wc"]) * dinv[:, None])          # column scale folded, then bf16
    h = jax.nn.relu(dinv[:, None] * (bf(A_hat) @ xw) + params["bc"])
    mask = batch[None, :] == jnp.arange(G)[:, None]
    pooled = jnp.max(jnp.where(mask[:, :, None], h[None, :, :], -jnp.inf), axis=1)
    first_idx = jnp.argmax(mask, axis=1)
    news = jax.nn.relu(bf(x[first_idx]) @ bf(params["w0"]) + params["b0"])
    z = jax.nn.relu(bf(pooled) @ bf(params["w1a"])
                    + bf(news) @ bf(params["w1b"]) + params["b1"])
    logits = bf(z) @ bf(params["w2"]) + params["b2"]
    return jax.nn.log_softmax(logits, axis=-1)


if __name__ == "__main__":
    # 2 star graphs (news root + retweet children), 96 nodes each -> N=192 so the
    # kernel runs multiple row tiles AND multiple K tiles (exercises both accumulators).
    G, per = 2, 96
    N, in_dim, hidden, out_dim = G * per, 8, 32, 4

    key = jax.random.PRNGKey(0)
    ks = jax.random.split(key, 10)

    x = jax.random.normal(ks[0], (N, in_dim), jnp.float32)
    batch = jnp.repeat(jnp.arange(G, dtype=jnp.int32), per)

    src_l, dst_l = [], []
    for g in range(G):
        root = g * per
        for c in range(1, per):
            src_l += [root, root + c]
            dst_l += [root + c, root]
    edge_index = jnp.array([src_l, dst_l], dtype=jnp.int32)

    def init(k, shape, scale=0.1):
        return scale * jax.random.normal(k, shape, jnp.float32)

    # lin1 weight pre-transposed [2H, H]; first H rows act on the pooled half,
    # last H rows on the news half (torch.cat([out, news], dim=1) order).
    w1_full = init(ks[5], (2 * hidden, hidden))
    params = {
        "wc": init(ks[1], (in_dim, hidden)),  "bc": init(ks[2], (1, hidden)),
        "w0": init(ks[3], (in_dim, hidden)),  "b0": init(ks[4], (1, hidden)),
        "w1a": w1_full[:hidden],              "w1b": w1_full[hidden:],
        "b1": init(ks[6], (1, hidden)),
        "w2": init(ks[7], (hidden, out_dim)), "b2": init(ks[8], (1, out_dim)),
    }

    out = upfd_forward(x, edge_index, batch, G, params, tile_m=16, tile_k=128)
    out = jax.block_until_ready(out)

    ref = _reference_forward(x, edge_index, batch, G, params)
    assert out.shape == (G, out_dim)
    assert jnp.allclose(out, ref, atol=1e-3, rtol=1e-3), (out, ref)

    print("KERNEL_OK")
</pallas_src>

<mosaic_0001>
module attributes {stable_mosaic.version = 11 : i64} {
  func.func @_upfd_kernel(%arg0: i32, %arg1: i32, %arg2: memref<12xi32, #tpu.memory_space<smem>>, %arg3: memref<12xi32, #tpu.memory_space<smem>>, %arg4: memref<16x128xbf16, #tpu.memory_space<vmem>>, %arg5: memref<128x128xbf16, #tpu.memory_space<vmem>>, %arg6: memref<16x1xf32, #tpu.memory_space<vmem>>, %arg7: memref<16x1xi32, #tpu.memory_space<vmem>>, %arg8: memref<8x128xbf16, #tpu.memory_space<vmem>>, %arg9: memref<1x128xf32, #tpu.memory_space<vmem>>, %arg10: memref<128x128xbf16, #tpu.memory_space<vmem>>, %arg11: memref<1x128xf32, #tpu.memory_space<vmem>>, %arg12: memref<128x128xbf16, #tpu.memory_space<vmem>>, %arg13: memref<128x128xbf16, #tpu.memory_space<vmem>>, %arg14: memref<1x128xf32, #tpu.memory_space<vmem>>, %arg15: memref<128x128xbf16, #tpu.memory_space<vmem>>, %arg16: memref<1x128xf32, #tpu.memory_space<vmem>>, %arg17: memref<8x128xf32, #tpu.memory_space<vmem>>, %arg18: memref<16x128xf32, #tpu.memory_space<vmem>>, %arg19: memref<8x128xf32, #tpu.memory_space<vmem>>) attributes {dimension_semantics = [#tpu.dimension_semantics<arbitrary>, #tpu.dimension_semantics<arbitrary>], iteration_bounds = array<i64: 12, 2>, scalar_prefetch = 2 : i64, scratch_operands = 2 : i64, tpu.core_type = #tpu.core_type<tc>, window_params = [{transform_indices = @transform_0, window_bounds = array<i64: 16, 128>}, {transform_indices = @transform_1, window_bounds = array<i64: 128, 128>}, {transform_indices = @transform_2, window_bounds = array<i64: 16, 1>}, {transform_indices = @transform_3, window_bounds = array<i64: 16, 1>}, {pipeline_mode = #tpu.pipeline_mode<synchronous>, transform_indices = @transform_4, window_bounds = array<i64: 8, 128>}, {pipeline_mode = #tpu.pipeline_mode<synchronous>, transform_indices = @transform_5, window_bounds = array<i64: 1, 128>}, {pipeline_mode = #tpu.pipeline_mode<synchronous>, transform_indices = @transform_6, window_bounds = array<i64: 128, 128>}, {pipeline_mode = #tpu.pipeline_mode<synchronous>, transform_indices = @transform_7, window_bounds = array<i64: 1, 128>}, {pipeline_mode = #tpu.pipeline_mode<synchronous>, transform_indices = @transform_8, window_bounds = array<i64: 128, 128>}, {pipeline_mode = #tpu.pipeline_mode<synchronous>, transform_indices = @transform_9, window_bounds = array<i64: 128, 128>}, {pipeline_mode = #tpu.pipeline_mode<synchronous>, transform_indices = @transform_10, window_bounds = array<i64: 1, 128>}, {pipeline_mode = #tpu.pipeline_mode<synchronous>, transform_indices = @transform_11, window_bounds = array<i64: 128, 128>}, {pipeline_mode = #tpu.pipeline_mode<synchronous>, transform_indices = @transform_12, window_bounds = array<i64: 1, 128>}, {pipeline_mode = #tpu.pipeline_mode<synchronous>, transform_indices = @transform_13, window_bounds = array<i64: 8, 128>}]} {
    %c0_i32 = arith.constant 0 : i32
    %0 = arith.cmpi eq, %arg0, %c0_i32 : i32
    %c0_i32_0 = arith.constant 0 : i32
    %1 = arith.cmpi eq, %arg1, %c0_i32_0 : i32
    %2 = arith.andi %0, %1 : i1
    %3 = arith.extui %2 : i1 to i32
    %c0_i32_1 = arith.constant 0 : i32
    %4 = arith.cmpi ne, %3, %c0_i32_1 : i32
    scf.if %4 {
      %cst_14 = arith.constant -1.000000e+30 : f32
      %22 = vector.broadcast %cst_14 : f32 to vector<8x128xf32>
      %c0_15 = arith.constant 0 : index
      %c0_16 = arith.constant 0 : index
      %23 = vector.load %arg19[%c0_15, %c0_16] : memref<8x128xf32, #tpu.memory_space<vmem>>, vector<8x128xf32>
      tpu.vector_store %arg19[%c0_15, %c0_16], %22 {strides = array<i32>} : memref<8x128xf32, #tpu.memory_space<vmem>>, vector<8x128xf32>,
    } else {
    }
    %c0_i32_2 = arith.constant 0 : i32
    %5 = arith.cmpi eq, %arg1, %c0_i32_2 : i32
    %6 = arith.extui %5 : i1 to i32
    %c0_i32_3 = arith.constant 0 : i32
    %7 = arith.cmpi ne, %6, %c0_i32_3 : i32
    scf.if %7 {
      %cst_14 = arith.constant 0.000000e+00 : f32
      %22 = vector.broadcast %cst_14 : f32 to vector<16x128xf32>
      %c0_15 = arith.constant 0 : index
      %c0_16 = arith.constant 0 : index
      %23 = vector.load %arg18[%c0_15, %c0_16] : memref<16x128xf32, #tpu.memory_space<vmem>>, vector<16x128xf32>
      tpu.vector_store %arg18[%c0_15, %c0_16], %22 {strides = array<i32>} : memref<16x128xf32, #tpu.memory_space<vmem>>, vector<16x128xf32>,
    } else {
    }
    %c0 = arith.constant 0 : index
    %c0_4 = arith.constant 0 : index
    %8 = vector.load %arg18[%c0, %c0_4] : memref<16x128xf32, #tpu.memory_space<vmem>>, vector<16x128xf32>
    %c0_5 = arith.constant 0 : index
    %c0_6 = arith.constant 0 : index
    %9 = vector.load %arg4[%c0_5, %c0_6] : memref<16x128xbf16, #tpu.memory_space<vmem>>, vector<16x128xbf16>
    %c0_7 = arith.constant 0 : index
    %c0_8 = arith.constant 0 : index
    %10 = vector.load %arg5[%c0_7, %c0_8] : memref<128x128xbf16, #tpu.memory_space<vmem>>, vector<128x128xbf16>
    %cst = arith.constant dense<0.000000e+00> : vector<16x128xf32>
    %11 = tpu.matmul %9, %10, %cst {dimension_numbers = #tpu.dot_dimension_numbers<[1], [0], [0], [1], [0, 0, 1, 1], [], []>} : vector<16x128xbf16>, vector<128x128xbf16>, vector<16x128xf32> -> vector<16x128xf32>
    %12 = arith.addf %8, %11 : vector<16x128xf32>
    %c0_9 = arith.constant 0 : index
    %c0_10 = arith.constant 0 : index
    %13 = vector.load %arg18[%c0_9, %c0_10] : memref<16x128xf32, #tpu.memory_space<vmem>>, vector<16x128xf32>
    tpu.vector_store %arg18[%c0_9, %c0_10], %12 {strides = array<i32>} : memref<16x128xf32, #tpu.memory_space<vmem>>, vector<16x128xf32>,
    %c1_i32 = arith.constant 1 : i32
    %14 = arith.cmpi eq, %arg1, %c1_i32 : i32
    %15 = arith.extui %14 : i1 to i32
    %c0_i32_11 = arith.constant 0 : i32
    %16 = arith.cmpi ne, %15, %c0_i32_11 : i32
    scf.if %16 {
      %c0_14 = arith.constant 0 : index
      %c0_15 = arith.constant 0 : index
      %22 = vector.load %arg6[%c0_14, %c0_15] : memref<16x1xf32, #tpu.memory_space<vmem>>, vector<16x1xf32>
      %c0_16 = arith.constant 0 : index
      %c0_17 = arith.constant 0 : index
      %23 = vector.load %arg18[%c0_16, %c0_17] : memref<16x128xf32, #tpu.memory_space<vmem>>, vector<16x128xf32>
      %24 = vector.broadcast %22 : vector<16x1xf32> to vector<16x128xf32>
      %25 = arith.mulf %24, %23 : vector<16x128xf32>
      %c0_18 = arith.constant 0 : index
      %c0_19 = arith.constant 0 : index
      %26 = vector.load %arg9[%c0_18, %c0_19] : memref<1x128xf32, #tpu.memory_space<vmem>>, vector<1x128xf32>
      %27 = vector.broadcast %26 : vector<1x128xf32> to vector<16x128xf32>
      %28 = arith.addf %25, %27 : vector<16x128xf32>
      %cst_20 = arith.constant 0.000000e+00 : f32
      %29 = vector.broadcast %cst_20 : f32 to vector<16x128xf32>
      %30 = arith.maximumf %28, %29 : vector<16x128xf32>
      %c0_21 = arith.constant 0 : index
      %c0_22 = arith.constant 0 : index
      %31 = vector.load %arg7[%c0_21, %c0_22] : memref<16x1xi32, #tpu.memory_space<vmem>>, vector<16x1xi32>
      %32 = tpu.iota {dimensions = array<i32: 0>} : vector<8x1xi32>
      %33 = arith.index_cast %arg0 : i32 to index
      %34 = memref.load %arg2[%33] : memref<12xi32, #tpu.memory_space<smem>>
      %35 = arith.index_cast %arg0 : i32 to index
      %36 = memref.load %arg3[%35] : memref<12xi32, #tpu.memory_space<smem>>
      %c1_i32_23 = arith.constant 1 : i32
      %37 = arith.addi %36, %c1_i32_23 : i32
      %c0_i32_24 = arith.constant 0 : i32
      %38 = arith.subi %37, %34 : i32
      %39 = arith.addi %34, %38 : i32
      %c1_i32_25 = arith.constant 1 : i32
      scf.for %arg20 = %34 to %39 step %c1_i32_25  : i32 {
        %40 = vector.broadcast %arg20 : i32 to vector<16x1xi32>
        %41 = arith.cmpi eq, %31, %40 : vector<16x1xi32>
        %cst_26 = arith.constant -1.000000e+30 : f32
        %42 = vector.shape_cast %41 : vector<16x1xi1> to vector<16x1xi1>
        %43 = vector.broadcast %42 : vector<16x1xi1> to vector<16x128xi1>
        %44 = vector.broadcast %cst_26 : f32 to vector<16x128xf32>
        %45 = arith.select %43, %30, %44 : vector<16x128xi1>, vector<16x128xf32>
        %cst_27 = arith.constant dense<0xFF800000> : vector<128xf32>
        %46 = vector.multi_reduction <maximumf>, %45, %cst_27 [0] : vector<16x128xf32> to vector<128xf32>
        %47 = vector.shape_cast %46 : vector<128xf32> to vector<1x128xf32>
        %c0_28 = arith.constant 0 : index
        %c0_29 = arith.constant 0 : index
        %48 = vector.load %arg19[%c0_28, %c0_29] : memref<8x128xf32, #tpu.memory_space<vmem>>, vector<8x128xf32>
        %49 = vector.broadcast %arg20 : i32 to vector<8x1xi32>
        %50 = arith.cmpi eq, %32, %49 : vector<8x1xi32>
        %cst_30 = arith.constant -1.000000e+30 : f32
        %51 = vector.shape_cast %50 : vector<8x1xi1> to vector<8x1xi1>
        %52 = vector.broadcast %51 : vector<8x1xi1> to vector<8x128xi1>
        %53 = vector.shape_cast %47 : vector<1x128xf32> to vector<1x128xf32>
        %54 = vector.broadcast %53 : vector<1x128xf32> to vector<8x128xf32>
        %55 = vector.broadcast %cst_30 : f32 to vector<8x128xf32>
        %56 = arith.select %52, %54, %55 : vector<8x128xi1>, vector<8x128xf32>
        %57 = arith.maximumf %48, %56 : vector<8x128xf32>
        %c0_31 = arith.constant 0 : index
        %c0_32 = arith.constant 0 : index
        %58 = vector.load %arg19[%c0_31, %c0_32] : memref<8x128xf32, #tpu.memory_space<vmem>>, vector<8x128xf32>
        tpu.vector_store %arg19[%c0_31, %c0_32], %57 {strides = array<i32>} : memref<8x128xf32, #tpu.memory_space<vmem>>, vector<8x128xf32>,
      }
    } else {
    }
    %c11_i32 = arith.constant 11 : i32
    %17 = arith.cmpi eq, %arg0, %c11_i32 : i32
    %c1_i32_12 = arith.constant 1 : i32
    %18 = arith.cmpi eq, %arg1, %c1_i32_12 : i32
    %19 = arith.andi %17, %18 : i1
    %20 = arith.extui %19 : i1 to i32
    %c0_i32_13 = arith.constant 0 : i32
    %21 = arith.cmpi ne, %20, %c0_i32_13 : i32
    scf.if %21 {
      %c0_14 = arith.constant 0 : index
      %c0_15 = arith.constant 0 : index
      %22 = vector.load %arg19[%c0_14, %c0_15] : memref<8x128xf32, #tpu.memory_space<vmem>>, vector<8x128xf32>
      %cst_16 = arith.constant -1.000000e+29 : f32
      %23 = vector.broadcast %cst_16 : f32 to vector<8x128xf32>
      %24 = arith.cmpf olt, %22, %23 : vector<8x128xf32>
      %cst_17 = arith.constant 0.000000e+00 : f32
      %25 = vector.broadcast %cst_17 : f32 to vector<8x128xf32>
      %26 = arith.select %24, %25, %22 : vector<8x128xi1>, vector<8x128xf32>
      %c0_18 = arith.constant 0 : index
      %c0_19 = arith.constant 0 : index
      %27 = vector.load %arg8[%c0_18, %c0_19] : memref<8x128xbf16, #tpu.memory_space<vmem>>, vector<8x128xbf16>
      %c0_20 = arith.constant 0 : index
      %c0_21 = arith.constant 0 : index
      %28 = vector.load %arg10[%c0_20, %c0_21] : memref<128x128xbf16, #tpu.memory_space<vmem>>, vector<128x128xbf16>
      %cst_22 = arith.constant dense<0.000000e+00> : vector<8x128xf32>
      %29 = tpu.matmul %27, %28, %cst_22 {dimension_numbers = #tpu.dot_dimension_numbers<[1], [0], [0], [1], [0, 0, 1, 1], [], []>} : vector<8x128xbf16>, vector<128x128xbf16>, vector<8x128xf32> -> vector<8x128xf32>
      %c0_23 = arith.constant 0 : index
      %c0_24 = arith.constant 0 : index
      %30 = vector.load %arg11[%c0_23, %c0_24] : memref<1x128xf32, #tpu.memory_space<vmem>>, vector<1x128xf32>
      %31 = vector.broadcast %30 : vector<1x128xf32> to vector<8x128xf32>
      %32 = arith.addf %29, %31 : vector<8x128xf32>
      %cst_25 = arith.constant 0.000000e+00 : f32
      %33 = vector.broadcast %cst_25 : f32 to vector<8x128xf32>
      %34 = arith.maximumf %32, %33 : vector<8x128xf32>
      %35 = arith.truncf %26 : vector<8x128xf32> to vector<8x128xbf16>
      %c0_26 = arith.constant 0 : index
      %c0_27 = arith.constant 0 : index
      %36 = vector.load %arg12[%c0_26, %c0_27] : memref<128x128xbf16, #tpu.memory_space<vmem>>, vector<128x128xbf16>
      %cst_28 = arith.constant dense<0.000000e+00> : vector<8x128xf32>
      %37 = tpu.matmul %35, %36, %cst_28 {dimension_numbers = #tpu.dot_dimension_numbers<[1], [0], [0], [1], [0, 0, 1, 1], [], []>} : vector<8x128xbf16>, vector<128x128xbf16>, vector<8x128xf32> -> vector<8x128xf32>
      %38 = arith.truncf %34 : vector<8x128xf32> to vector<8x128xbf16>
      %c0_29 = arith.constant 0 : index
      %c0_30 = arith.constant 0 : index
      %39 = vector.load %arg13[%c0_29, %c0_30] : memref<128x128xbf16, #tpu.memory_space<vmem>>, vector<128x128xbf16>
      %cst_31 = arith.constant dense<0.000000e+00> : vector<8x128xf32>
      %40 = tpu.matmul %38, %39, %cst_31 {dimension_numbers = #tpu.dot_dimension_numbers<[1], [0], [0], [1], [0, 0, 1, 1], [], []>} : vector<8x128xbf16>, vector<128x128xbf16>, vector<8x128xf32> -> vector<8x128xf32>
      %41 = arith.addf %37, %40 : vector<8x128xf32>
      %c0_32 = arith.constant 0 : index
      %c0_33 = arith.constant 0 : index
      %42 = vector.load %arg14[%c0_32, %c0_33] : memref<1x128xf32, #tpu.memory_space<vmem>>, vector<1x128xf32>
      %43 = vector.broadcast %42 : vector<1x128xf32> to vector<8x128xf32>
      %44 = arith.addf %41, %43 : vector<8x128xf32>
      %cst_34 = arith.constant 0.000000e+00 : f32
      %45 = vector.broadcast %cst_34 : f32 to vector<8x128xf32>
      %46 = arith.maximumf %44, %45 : vector<8x128xf32>
      %47 = arith.truncf %46 : vector<8x128xf32> to vector<8x128xbf16>
      %c0_35 = arith.constant 0 : index
      %c0_36 = arith.constant 0 : index
      %48 = vector.load %arg15[%c0_35, %c0_36] : memref<128x128xbf16, #tpu.memory_space<vmem>>, vector<128x128xbf16>
      %cst_37 = arith.constant dense<0.000000e+00> : vector<8x128xf32>
      %49 = tpu.matmul %47, %48, %cst_37 {dimension_numbers = #tpu.dot_dimension_numbers<[1], [0], [0], [1], [0, 0, 1, 1], [], []>} : vector<8x128xbf16>, vector<128x128xbf16>, vector<8x128xf32> -> vector<8x128xf32>
      %c0_38 = arith.constant 0 : index
      %c0_39 = arith.constant 0 : index
      %50 = vector.load %arg16[%c0_38, %c0_39] : memref<1x128xf32, #tpu.memory_space<vmem>>, vector<1x128xf32>
      %51 = vector.broadcast %50 : vector<1x128xf32> to vector<8x128xf32>
      %52 = arith.addf %49, %51 : vector<8x128xf32>
      %cst_40 = arith.constant dense<0xFF800000> : vector<8xf32>
      %53 = vector.multi_reduction <maximumf>, %52, %cst_40 [1] : vector<8x128xf32> to vector<8xf32>
      %54 = vector.shape_cast %53 : vector<8xf32> to vector<8x1xf32>
      %55 = vector.broadcast %54 : vector<8x1xf32> to vector<8x128xf32>
      %56 = arith.subf %52, %55 : vector<8x128xf32>
      %57 = math.exp %56 : vector<8x128xf32>
      %cst_41 = arith.constant dense<0.000000e+00> : vector<8xf32>
      %58 = vector.multi_reduction <add>, %57, %cst_41 [1] : vector<8x128xf32> to vector<8xf32>
      %59 = vector.shape_cast %58 : vector<8xf32> to vector<8x1xf32>
      %60 = math.log %59 : vector<8x1xf32>
      %61 = arith.addf %54, %60 : vector<8x1xf32>
      %62 = vector.broadcast %61 : vector<8x1xf32> to vector<8x128xf32>
      %63 = arith.subf %52, %62 : vector<8x128xf32>
      %c0_42 = arith.constant 0 : index
      %c0_43 = arith.constant 0 : index
      %64 = vector.load %arg17[%c0_42, %c0_43] : memref<8x128xf32, #tpu.memory_space<vmem>>, vector<8x128xf32>
      tpu.vector_store %arg17[%c0_42, %c0_43], %63 {strides = array<i32>} : memref<8x128xf32, #tpu.memory_space<vmem>>, vector<8x128xf32>,
    } else {
    }
    return
  }
  func.func @transform_0(%arg0: i32, %arg1: i32, %arg2: memref<12xi32, #tpu.memory_space<smem>>, %arg3: memref<12xi32, #tpu.memory_space<smem>>) -> (i32, i32) {
    %c0_i32 = arith.constant 0 : i32
    return %arg0, %arg1 : i32, i32
  }
  func.func @transform_1(%arg0: i32, %arg1: i32, %arg2: memref<12xi32, #tpu.memory_space<smem>>, %arg3: memref<12xi32, #tpu.memory_space<smem>>) -> (i32, i32) {
    %c0_i32 = arith.constant 0 : i32
    %c0_i32_0 = arith.constant 0 : i32
    return %arg1, %c0_i32 : i32, i32
  }
  func.func @transform_2(%arg0: i32, %arg1: i32, %arg2: memref<12xi32, #tpu.memory_space<smem>>, %arg3: memref<12xi32, #tpu.memory_space<smem>>) -> (i32, i32) {
    %c0_i32 = arith.constant 0 : i32
    %c0_i32_0 = arith.constant 0 : i32
    return %arg0, %c0_i32 : i32, i32
  }
  func.func @transform_3(%arg0: i32, %arg1: i32, %arg2: memref<12xi32, #tpu.memory_space<smem>>, %arg3: memref<12xi32, #tpu.memory_space<smem>>) -> (i32, i32) {
    %c0_i32 = arith.constant 0 : i32
    %c0_i32_0 = arith.constant 0 : i32
    return %arg0, %c0_i32 : i32, i32
  }
  func.func @transform_4(%arg0: i32, %arg1: i32, %arg2: memref<12xi32, #tpu.memory_space<smem>>, %arg3: memref<12xi32, #tpu.memory_space<smem>>) -> (i32, i32) {
    %c0_i32 = arith.constant 0 : i32
    %c0_i32_0 = arith.constant 0 : i32
    %c0_i32_1 = arith.constant 0 : i32
    return %c0_i32, %c0_i32_0 : i32, i32
  }
  func.func @transform_5(%arg0: i32, %arg1: i32, %arg2: memref<12xi32, #tpu.memory_space<smem>>, %arg3: memref<12xi32, #tpu.memory_space<smem>>) -> (i32, i32) {
    %c0_i32 = arith.constant 0 : i32
    %c0_i32_0 = arith.constant 0 : i32
    %c0_i32_1 = arith.constant 0 : i32
    return %c0_i32, %c0_i32_0 : i32, i32
  }
  func.func @transform_6(%arg0: i32, %arg1: i32, %arg2: memref<12xi32, #tpu.memory_space<smem>>, %arg3: memref<12xi32, #tpu.memory_space<smem>>) -> (i32, i32) {
    %c0_i32 = arith.constant 0 : i32
    %c0_i32_0 = arith.constant 0 : i32
    %c0_i32_1 = arith.constant 0 : i32
    return %c0_i32, %c0_i32_0 : i32, i32
  }
  func.func @transform_7(%arg0: i32, %arg1: i32, %arg2: memref<12xi32, #tpu.memory_space<smem>>, %arg3: memref<12xi32, #tpu.memory_space<smem>>) -> (i32, i32) {
    %c0_i32 = arith.constant 0 : i32
    %c0_i32_0 = arith.constant 0 : i32
    %c0_i32_1 = arith.constant 0 : i32
    return %c0_i32, %c0_i32_0 : i32, i32
  }
  func.func @transform_8(%arg0: i32, %arg1: i32, %arg2: memref<12xi32, #tpu.memory_space<smem>>, %arg3: memref<12xi32, #tpu.memory_space<smem>>) -> (i32, i32) {
    %c0_i32 = arith.constant 0 : i32
    %c0_i32_0 = arith.constant 0 : i32
    %c0_i32_1 = arith.constant 0 : i32
    return %c0_i32, %c0_i32_0 : i32, i32
  }
  func.func @transform_9(%arg0: i32, %arg1: i32, %arg2: memref<12xi32, #tpu.memory_space<smem>>, %arg3: memref<12xi32, #tpu.memory_space<smem>>) -> (i32, i32) {
    %c0_i32 = arith.constant 0 : i32
    %c0_i32_0 = arith.constant 0 : i32
    %c0_i32_1 = arith.constant 0 : i32
    return %c0_i32, %c0_i32_0 : i32, i32
  }
  func.func @transform_10(%arg0: i32, %arg1: i32, %arg2: memref<12xi32, #tpu.memory_space<smem>>, %arg3: memref<12xi32, #tpu.memory_space<smem>>) -> (i32, i32) {
    %c0_i32 = arith.constant 0 : i32
    %c0_i32_0 = arith.constant 0 : i32
    %c0_i32_1 = arith.constant 0 : i32
    return %c0_i32, %c0_i32_0 : i32, i32
  }
  func.func @transform_11(%arg0: i32, %arg1: i32, %arg2: memref<12xi32, #tpu.memory_space<smem>>, %arg3: memref<12xi32, #tpu.memory_space<smem>>) -> (i32, i32) {
    %c0_i32 = arith.constant 0 : i32
    %c0_i32_0 = arith.constant 0 : i32
    %c0_i32_1 = arith.constant 0 : i32
    return %c0_i32, %c0_i32_0 : i32, i32
  }
  func.func @transform_12(%arg0: i32, %arg1: i32, %arg2: memref<12xi32, #tpu.memory_space<smem>>, %arg3: memref<12xi32, #tpu.memory_space<smem>>) -> (i32, i32) {
    %c0_i32 = arith.constant 0 : i32
    %c0_i32_0 = arith.constant 0 : i32
    %c0_i32_1 = arith.constant 0 : i32
    return %c0_i32, %c0_i32_0 : i32, i32
  }
  func.func @transform_13(%arg0: i32, %arg1: i32, %arg2: memref<12xi32, #tpu.memory_space<smem>>, %arg3: memref<12xi32, #tpu.memory_space<smem>>) -> (i32, i32) {
    %c0_i32 = arith.constant 0 : i32
    %c0_i32_0 = arith.constant 0 : i32
    %c0_i32_1 = arith.constant 0 : i32
    return %c0_i32, %c0_i32_0 : i32, i32
  }
}

</mosaic_0001>

<llo_original>
// kernel: tpu_custom_call.1
$region0: #{tpu_custom_call.1}
  #allocation0 [shape = 'u32[]', space=smem, size = 0x4, offset = 0x4, fixed_abs, tag = 'smem constant byte address 0x4 - core index']
  #allocation1 [shape = 'u32[144,128]{1,0:T(1,128)}', space=vmem, size = 0x12000, scoped, tag = 'internal scratch']
  #allocation2 [shape = 'f32[16,128]{1,0:T(8,128)}', space=vmem, size = 0x2000, scoped, tag = 'scratch operand']
  #allocation3 [shape = 'f32[8,128]{1,0:T(8,128)}', space=vmem, size = 0x1000, scoped, tag = 'scratch operand']
  #allocation4 [shape = 's32[1]{0}', space=sflag, size = 0x4, scoped, tag = 'scoped memory for tpu_custom_call.1']
  #allocation5 [shape = 'u8[512]{0}', space=smem, size = 0x200, scoped, tag = 'prefetched SMEM operand 0']
  #allocation6 [shape = 'u8[512]{0}', space=smem, size = 0x200, scoped, tag = 'prefetched SMEM operand 1']
  %s0 = inlined_call_operand.hbm [shape: s32[12], index: 0, kind: input, shape index: {}]
  %s1 = inlined_call_operand.hbm [shape: s32[12], index: 1, kind: input, shape index: {}]
  %s2 = inlined_call_operand.vmem [shape: bf16[192,256], index: 2, kind: input, shape index: {}]
  %s3 = inlined_call_operand.vmem [shape: bf16[256,128], index: 3, kind: input, shape index: {}]
  %s4 = inlined_call_operand.vmem [shape: f32[192,1], index: 4, kind: input, shape index: {}]
  %s5 = inlined_call_operand.vmem [shape: s32[192,1], index: 5, kind: input, shape index: {}]
  %s6 = inlined_call_operand.vmem [shape: bf16[8,128], index: 6, kind: input, shape index: {}]
  %s7 = inlined_call_operand.vmem [shape: f32[1,128], index: 7, kind: input, shape index: {}]
  %s8 = inlined_call_operand.vmem [shape: bf16[128,128], index: 8, kind: input, shape index: {}]
  %s9 = inlined_call_operand.vmem [shape: f32[1,128], index: 9, kind: input, shape index: {}]
  %s10 = inlined_call_operand.hbm [shape: bf16[128,128], index: 10, kind: input, shape index: {}]
  %s11 = inlined_call_operand.hbm [shape: bf16[128,128], index: 11, kind: input, shape index: {}]
  %s12 = inlined_call_operand.vmem [shape: f32[1,128], index: 12, kind: input, shape index: {}]
  %s13 = inlined_call_operand.hbm [shape: bf16[128,128], index: 13, kind: input, shape index: {}]
  %s14 = inlined_call_operand.vmem [shape: f32[1,128], index: 14, kind: input, shape index: {}]
  %s15 = inlined_call_operand.hbm [shape: f32[8,128], index: 15, kind: output, shape index: {}]
  %s16 = sld [smem:[#allocation0]]
  $region161: #{tpu_custom_call.1} parent=0
    _
  %s18 = ssub.s32 1, %s16
  %s19 = scalar_select 0, %s18, %s16
  %21 = dma.hbm_to_smem %s0, 16, [#allocation5], [#allocation4]
  %23 = dma.hbm_to_smem %s1, 16, [#allocation6], [#allocation4]
  %24 = dma.done [#allocation4], 32
  %25 = sfence
  $region1: #{tpu_custom_call.1} parent=0
    #allocation7 [shape = 'u8[8192]{0}', space=vmem, size = 0x2000, scoped, tag = 'input window, operand 2']
    #allocation8 [shape = 'u8[32768]{0}', space=vmem, size = 0x8000, scoped, tag = 'input window, operand 10, single buffered']
    #allocation9 [shape = 's32[2]{0}', space=sflag, size = 0x8, scoped, tag = 'scoped memory for tpu_custom_call.1']
    #allocation10 [shape = 's32[2]{0}', space=sflag, size = 0x8, scoped, tag = 'scoped memory for tpu_custom_call.1']
    #allocation11 [shape = 'u8[32768]{0}', space=vmem, size = 0x8000, scoped, tag = 'input window, operand 11, single buffered']
    #allocation12 [shape = 's32[1]{0}', space=sflag, size = 0x4, scoped, tag = 'scoped memory for tpu_custom_call.1']
    #allocation13 [shape = 'u8[32768]{0}', space=vmem, size = 0x8000, scoped, tag = 'input window, operand 13, single buffered']
    #allocation14 [shape = 'u8[4096]{0}', space=vmem, size = 0x1000, scoped, tag = 'output window, operand 0, single buffered']
    %26 = vsyncpa [#allocation9], 0
    %27 = vsyncpa [#allocation12], 0
    %28 = vsyncpa [#allocation10], 0
    loop: start=0, step=1, limit=26
    $region2: #{tpu_custom_call.1} parent=1 // loop_pre_header
      _
    $region3: #{tpu_custom_call.1} parent=1 // loop_header
      %s30 = sphi 0, %s34
      %p31 = scmp.ge.s32.totalorder %s30, 26
      %s37 = sphi 0, %s49
      %s38 = sphi 0, %s45
      %s39 = sphi 0, %s37
      %s40 = sphi 0, %s38
      %s41 = sphi 0, %s39
      %s42 = sphi 0, %s40
      %s54 = sphi 0, %s56
      %s57 = sphi 0, %s54
      %s58 = sphi 0, %s57
      %s74 = sphi 0, %s58
      %s80 = sphi 0, %s82
      %s83 = sphi 0, %s80
      %s84 = sphi 0, %s83
      %s100 = sphi 0, %s84
      %s106 = sphi 0, %s108
      %s109 = sphi 0, %s106
      %s110 = sphi 0, %s109
      %s126 = sphi 0, %s110
      %s132 = sphi 0, %s134
      %s135 = sphi 0, %s132
      %s136 = sphi 0, %s135
      %s152 = sphi 0, %s136
      %s156 = sphi 0, %s156
      %s158 = sphi 0, %s156
      %s159 = sphi 0, %s158
      %s173 = sphi 0, %s159
      %s177 = sphi 0, %s177
      %s179 = sphi 0, %s177
      %s180 = sphi 0, %s179
      %s194 = sphi 0, %s180
      %s198 = sphi 0, %s198
      %s200 = sphi 0, %s198
      %s201 = sphi 0, %s200
      %s215 = sphi 0, %s201
      %s219 = sphi 0, %s219
      %s221 = sphi 0, %s219
      %s222 = sphi 0, %s221
      %s236 = sphi 0, %s222
      %s240 = sphi 0, %s240
      %s242 = sphi 0, %s240
      %s243 = sphi 0, %s242
      %s257 = sphi 0, %s243
      %s261 = sphi 0, %s261
      %s263 = sphi 0, %s261
      %s264 = sphi 0, %s263
      %s278 = sphi 0, %s264
      %s282 = sphi 0, %s282
      %s284 = sphi 0, %s282
      %s285 = sphi 0, %s284
      %s299 = sphi 0, %s285
      %s303 = sphi 0, %s303
      %s305 = sphi 0, %s303
      %s306 = sphi 0, %s305
      %s320 = sphi 0, %s306
      %s324 = sphi 0, %s324
      %s326 = sphi 0, %s324
      %s327 = sphi 0, %s326
      %s341 = sphi 0, %s327
      %s345 = sphi 0, %s345
      %s347 = sphi 0, %s345
      %s348 = sphi 0, %s347
      %s362 = sphi 0, %s348
    $region4: #{tpu_custom_call.1} parent=1 // loop_header_branch
      %33 = sbr.rel (%p31) target = $region8
    $region5: #{tpu_custom_call.1} parent=1 // loop_body
      %s35 = ssub.s32 %s30, 1
      %s36 = ssub.s32 %s30, 2
      %s43 = sadd.s32 1, %s38
      %p44 = scmp.ge.s32.totalorder %s43, 2
      %s45 = scalar_select %p44, 0, %s43
      %s46 = sadd.s32 1, %s37
      %s47 = scalar_select %p44, %s46, %s37
      %p48 = scmp.ge.s32.totalorder %s47, 12
      %s49 = scalar_select %p48, 0, %s47
      %s50 = ssub.s32 %s37, %s49
      %s51 = ssub.s32 %s38, %s45
      %s52 = sor.u32 %s50, %s51
      %p53 = scmp.eq.s32.totalorder %s52, 0
      %s55 = sadd.s32 %s54, 1
      %s56 = scalar_select %p53, %s54, %s55
      %p59 = pneg %p53
      %p60 = scmp.eq.s32.totalorder %s30, 23
      %p61 = por %p59, %p60
      %p62 = scmp.ne.s32.totalorder %s54, %s57
      %p63 = scmp.eq.s32.totalorder %s30, 0
      %p64 = por %p62, %p63
      %p65 = scmp.ne.s32.totalorder %s54, %s57
      %p66 = scmp.eq.s32.totalorder %s35, 23
      %p67 = por %p65, %p66
      %p68 = scmp.ne.s32.totalorder %s57, %s58
      %p69 = scmp.eq.s32.totalorder %s35, 0
      %p70 = por %p68, %p69
      %p71 = scmp.ne.s32.totalorder %s57, %s58
      %p72 = scmp.eq.s32.totalorder %s36, 23
      %p73 = por %p71, %p72
      %p75 = scmp.ne.s32.totalorder %s58, %s74
      %p76 = scmp.eq.s32.totalorder %s36, 0
      %p77 = por %p75, %p76
      %s78 = ssub.s32 %s38, %s45
      %p79 = scmp.eq.s32.totalorder %s78, 0
      %s81 = sadd.s32 %s80, 1
      %s82 = scalar_select %p79, %s80, %s81
      %p85 = pneg %p79
      %p86 = scmp.eq.s32.totalorder %s30, 23
      %p87 = por %p85, %p86
      %p88 = scmp.ne.s32.totalorder %s80, %s83
      %p89 = scmp.eq.s32.totalorder %s30, 0
      %p90 = por %p88, %p89
      %p91 = scmp.ne.s32.totalorder %s80, %s83
      %p92 = scmp.eq.s32.totalorder %s35, 23
      %p93 = por %p91, %p92
      %p94 = scmp.ne.s32.totalorder %s83, %s84
      %p95 = scmp.eq.s32.totalorder %s35, 0
      %p96 = por %p94, %p95
      %p97 = scmp.ne.s32.totalorder %s83, %s84
      %p98 = scmp.eq.s32.totalorder %s36, 23
      %p99 = por %p97, %p98
      %p101 = scmp.ne.s32.totalorder %s84, %s100
      %p102 = scmp.eq.s32.totalorder %s36, 0
      %p103 = por %p101, %p102
      %s104 = ssub.s32 %s37, %s49
      %p105 = scmp.eq.s32.totalorder %s104, 0
      %s107 = sadd.s32 %s106, 1
      %s108 = scalar_select %p105, %s106, %s107
      %p111 = pneg %p105
      %p112 = scmp.eq.s32.totalorder %s30, 23
      %p113 = por %p111, %p112
      %p114 = scmp.ne.s32.totalorder %s106, %s109
      %p115 = scmp.eq.s32.totalorder %s30, 0
      %p116 = por %p114, %p115
      %p117 = scmp.ne.s32.totalorder %s106, %s109
      %p118 = scmp.eq.s32.totalorder %s35, 23
      %p119 = por %p117, %p118
      %p120 = scmp.ne.s32.totalorder %s109, %s110
      %p121 = scmp.eq.s32.totalorder %s35, 0
      %p122 = por %p120, %p121
      %p123 = scmp.ne.s32.totalorder %s109, %s110
      %p124 = scmp.eq.s32.totalorder %s36, 23
      %p125 = por %p123, %p124
      %p127 = scmp.ne.s32.totalorder %s110, %s126
      %p128 = scmp.eq.s32.totalorder %s36, 0
      %p129 = por %p127, %p128
      %s130 = ssub.s32 %s37, %s49
      %p131 = scmp.eq.s32.totalorder %s130, 0
      %s133 = sadd.s32 %s132, 1
      %s134 = scalar_select %p131, %s132, %s133
      %p137 = pneg %p131
      %p138 = scmp.eq.s32.totalorder %s30, 23
      %p139 = por %p137, %p138
      %p140 = scmp.ne.s32.totalorder %s132, %s135
      %p141 = scmp.eq.s32.totalorder %s30, 0
      %p142 = por %p140, %p141
      %p143 = scmp.ne.s32.totalorder %s132, %s135
      %p144 = scmp.eq.s32.totalorder %s35, 23
      %p145 = por %p143, %p144
      %p146 = scmp.ne.s32.totalorder %s135, %s136
      %p147 = scmp.eq.s32.totalorder %s35, 0
      %p148 = por %p146, %p147
      %p149 = scmp.ne.s32.totalorder %s135, %s136
      %p150 = scmp.eq.s32.totalorder %s36, 23
      %p151 = por %p149, %p150
      %p153 = scmp.ne.s32.totalorder %s136, %s152
      %p154 = scmp.eq.s32.totalorder %s36, 0
      %p155 = por %p153, %p154
      %s157 = sadd.s32 %s156, 1
      %p160 = scmp.eq.s32.totalorder %s30, 23
      %p161 = scmp.ne.s32.totalorder %s156, %s158
      %p162 = scmp.eq.s32.totalorder %s30, 0
      %p163 = por %p161, %p162
      %p164 = scmp.ne.s32.totalorder %s156, %s158
      %p165 = scmp.eq.s32.totalorder %s35, 23
      %p166 = por %p164, %p165
      %p167 = scmp.ne.s32.totalorder %s158, %s159
      %p168 = scmp.eq.s32.totalorder %s35, 0
      %p169 = por %p167, %p168
      %p170 = scmp.ne.s32.totalorder %s158, %s159
      %p171 = scmp.eq.s32.totalorder %s36, 23
      %p172 = por %p170, %p171
      %p174 = scmp.ne.s32.totalorder %s159, %s173
      %p175 = scmp.eq.s32.totalorder %s36, 0
      %p176 = por %p174, %p175
      %s178 = sadd.s32 %s177, 1
      %p181 = scmp.eq.s32.totalorder %s30, 23
      %p182 = scmp.ne.s32.totalorder %s177, %s179
      %p183 = scmp.eq.s32.totalorder %s30, 0
      %p184 = por %p182, %p183
      %p185 = scmp.ne.s32.totalorder %s177, %s179
      %p186 = scmp.eq.s32.totalorder %s35, 23
      %p187 = por %p185, %p186
      %p188 = scmp.ne.s32.totalorder %s179, %s180
      %p189 = scmp.eq.s32.totalorder %s35, 0
      %p190 = por %p188, %p189
      %p191 = scmp.ne.s32.totalorder %s179, %s180
      %p192 = scmp.eq.s32.totalorder %s36, 23
      %p193 = por %p191, %p192
      %p195 = scmp.ne.s32.totalorder %s180, %s194
      %p196 = scmp.eq.s32.totalorder %s36, 0
      %p197 = por %p195, %p196
      %s199 = sadd.s32 %s198, 1
      %p202 = scmp.eq.s32.totalorder %s30, 23
      %p203 = scmp.ne.s32.totalorder %s198, %s200
      %p204 = scmp.eq.s32.totalorder %s30, 0
      %p205 = por %p203, %p204
      %p206 = scmp.ne.s32.totalorder %s198, %s200
      %p207 = scmp.eq.s32.totalorder %s35, 23
      %p208 = por %p206, %p207
      %p209 = scmp.ne.s32.totalorder %s200, %s201
      %p210 = scmp.eq.s32.totalorder %s35, 0
      %p211 = por %p209, %p210
      %p212 = scmp.ne.s32.totalorder %s200, %s201
      %p213 = scmp.eq.s32.totalorder %s36, 23
      %p214 = por %p212, %p213
      %p216 = scmp.ne.s32.totalorder %s201, %s215
      %p217 = scmp.eq.s32.totalorder %s36, 0
      %p218 = por %p216, %p217
      %s220 = sadd.s32 %s219, 1
      %p223 = scmp.eq.s32.totalorder %s30, 23
      %p224 = scmp.ne.s32.totalorder %s219, %s221
      %p225 = scmp.eq.s32.totalorder %s30, 0
      %p226 = por %p224, %p225
      %p227 = scmp.ne.s32.totalorder %s219, %s221
      %p228 = scmp.eq.s32.totalorder %s35, 23
      %p229 = por %p227, %p228
      %p230 = scmp.ne.s32.totalorder %s221, %s222
      %p231 = scmp.eq.s32.totalorder %s35, 0
      %p232 = por %p230, %p231
      %p233 = scmp.ne.s32.totalorder %s221, %s222
      %p234 = scmp.eq.s32.totalorder %s36, 23
      %p235 = por %p233, %p234
      %p237 = scmp.ne.s32.totalorder %s222, %s236
      %p238 = scmp.eq.s32.totalorder %s36, 0
      %p239 = por %p237, %p238
      %s241 = sadd.s32 %s240, 1
      %p244 = scmp.eq.s32.totalorder %s30, 23
      %p245 = scmp.ne.s32.totalorder %s240, %s242
      %p246 = scmp.eq.s32.totalorder %s30, 0
      %p247 = por %p245, %p246
      %p248 = scmp.ne.s32.totalorder %s240, %s242
      %p249 = scmp.eq.s32.totalorder %s35, 23
      %p250 = por %p248, %p249
      %p251 = scmp.ne.s32.totalorder %s242, %s243
      %p252 = scmp.eq.s32.totalorder %s35, 0
      %p253 = por %p251, %p252
      %p254 = scmp.ne.s32.totalorder %s242, %s243
      %p255 = scmp.eq.s32.totalorder %s36, 23
      %p256 = por %p254, %p255
      %p258 = scmp.ne.s32.totalorder %s243, %s257
      %p259 = scmp.eq.s32.totalorder %s36, 0
      %p260 = por %p258, %p259
      %s262 = sadd.s32 %s261, 1
      %p265 = scmp.eq.s32.totalorder %s30, 23
      %p266 = scmp.ne.s32.totalorder %s261, %s263
      %p267 = scmp.eq.s32.totalorder %s30, 0
      %p268 = por %p266, %p267
      %p269 = scmp.ne.s32.totalorder %s261, %s263
      %p270 = scmp.eq.s32.totalorder %s35, 23
      %p271 = por %p269, %p270
      %p272 = scmp.ne.s32.totalorder %s263, %s264
      %p273 = scmp.eq.s32.totalorder %s35, 0
      %p274 = por %p272, %p273
      %p275 = scmp.ne.s32.totalorder %s263, %s264
      %p276 = scmp.eq.s32.totalorder %s36, 23
      %p277 = por %p275, %p276
      %p279 = scmp.ne.s32.totalorder %s264, %s278
      %p280 = scmp.eq.s32.totalorder %s36, 0
      %p281 = por %p279, %p280
      %s283 = sadd.s32 %s282, 1
      %p286 = scmp.eq.s32.totalorder %s30, 23
      %p287 = scmp.ne.s32.totalorder %s282, %s284
      %p288 = scmp.eq.s32.totalorder %s30, 0
      %p289 = por %p287, %p288
      %p290 = scmp.ne.s32.totalorder %s282, %s284
      %p291 = scmp.eq.s32.totalorder %s35, 23
      %p292 = por %p290, %p291
      %p293 = scmp.ne.s32.totalorder %s284, %s285
      %p294 = scmp.eq.s32.totalorder %s35, 0
      %p295 = por %p293, %p294
      %p296 = scmp.ne.s32.totalorder %s284, %s285
      %p297 = scmp.eq.s32.totalorder %s36, 23
      %p298 = por %p296, %p297
      %p300 = scmp.ne.s32.totalorder %s285, %s299
      %p301 = scmp.eq.s32.totalorder %s36, 0
      %p302 = por %p300, %p301
      %s304 = sadd.s32 %s303, 1
      %p307 = scmp.eq.s32.totalorder %s30, 23
      %p308 = scmp.ne.s32.totalorder %s303, %s305
      %p309 = scmp.eq.s32.totalorder %s30, 0
      %p310 = por %p308, %p309
      %p311 = scmp.ne.s32.totalorder %s303, %s305
      %p312 = scmp.eq.s32.totalorder %s35, 23
      %p313 = por %p311, %p312
      %p314 = scmp.ne.s32.totalorder %s305, %s306
      %p315 = scmp.eq.s32.totalorder %s35, 0
      %p316 = por %p314, %p315
      %p317 = scmp.ne.s32.totalorder %s305, %s306
      %p318 = scmp.eq.s32.totalorder %s36, 23
      %p319 = por %p317, %p318
      %p321 = scmp.ne.s32.totalorder %s306, %s320
      %p322 = scmp.eq.s32.totalorder %s36, 0
      %p323 = por %p321, %p322
      %s325 = sadd.s32 %s324, 1
      %p328 = scmp.eq.s32.totalorder %s30, 23
      %p329 = scmp.ne.s32.totalorder %s324, %s326
      %p330 = scmp.eq.s32.totalorder %s30, 0
      %p331 = por %p329, %p330
      %p332 = scmp.ne.s32.totalorder %s324, %s326
      %p333 = scmp.eq.s32.totalorder %s35, 23
      %p334 = por %p332, %p333
      %p335 = scmp.ne.s32.totalorder %s326, %s327
      %p336 = scmp.eq.s32.totalorder %s35, 0
      %p337 = por %p335, %p336
      %p338 = scmp.ne.s32.totalorder %s326, %s327
      %p339 = scmp.eq.s32.totalorder %s36, 23
      %p340 = por %p338, %p339
      %p342 = scmp.ne.s32.totalorder %s327, %s341
      %p343 = scmp.eq.s32.totalorder %s36, 0
      %p344 = por %p342, %p343
      %s346 = sadd.s32 %s345, 1
      %p349 = scmp.eq.s32.totalorder %s30, 23
      %p350 = scmp.ne.s32.totalorder %s345, %s347
      %p351 = scmp.eq.s32.totalorder %s30, 0
      %p352 = por %p350, %p351
      %p353 = scmp.ne.s32.totalorder %s345, %s347
      %p354 = scmp.eq.s32.totalorder %s35, 23
      %p355 = por %p353, %p354
      %p356 = scmp.ne.s32.totalorder %s347, %s348
      %p357 = scmp.eq.s32.totalorder %s35, 0
      %p358 = por %p356, %p357
      %p359 = scmp.ne.s32.totalorder %s347, %s348
      %p360 = scmp.eq.s32.totalorder %s36, 23
      %p361 = por %p359, %p360
      %p363 = scmp.ne.s32.totalorder %s348, %s362
      %p364 = scmp.eq.s32.totalorder %s36, 0
      %p365 = por %p363, %p364
      %p366 = scmp.le.s32.totalorder 1, %s30
      %p367 = scmp.lt.s32.totalorder %s30, 25
      %p368 = pnand %p366, %p367
      %p369 = pneg %p368
      // Predicated region
      $region9: #{tpu_custom_call.1} parent=5 // pred_check
        _
      $region10: #{tpu_custom_call.1} parent=5 // pred_check_branch
        %371 = sbr.rel (%p368) target = $region12
      $region11: #{tpu_custom_call.1} parent=5 // pred_region
        %s372 = ssub.s32 %s30, 1
        // Predicated region
        $region13: #{tpu_custom_call.1} parent=11 // pred_check
          %p373 = pneg %p169
        $region14: #{tpu_custom_call.1} parent=11 // pred_check_branch
          %375 = sbr.rel (%p373) target = $region16
        $region15: #{tpu_custom_call.1} parent=11 // pred_region
          _
        $region16: #{tpu_custom_call.1} parent=11 // pred_fallthru
          _
        // Predicated region
        $region17: #{tpu_custom_call.1} parent=11 // pred_check
          %p376 = pneg %p190
        $region18: #{tpu_custom_call.1} parent=11 // pred_check_branch
          %378 = sbr.rel (%p376) target = $region20
        $region19: #{tpu_custom_call.1} parent=11 // pred_region
          _
        $region20: #{tpu_custom_call.1} parent=11 // pred_fallthru
          _
        // Predicated region
        $region21: #{tpu_custom_call.1} parent=11 // pred_check
          %p379 = pneg %p211
        $region22: #{tpu_custom_call.1} parent=11 // pred_check_branch
          %381 = sbr.rel (%p379) target = $region24
        $region23: #{tpu_custom_call.1} parent=11 // pred_region
          _
        $region24: #{tpu_custom_call.1} parent=11 // pred_fallthru
          _
        // Predicated region
        $region25: #{tpu_custom_call.1} parent=11 // pred_check
          %p382 = pneg %p232
        $region26: #{tpu_custom_call.1} parent=11 // pred_check_branch
          %384 = sbr.rel (%p382) target = $region28
        $region27: #{tpu_custom_call.1} parent=11 // pred_region
          _
        $region28: #{tpu_custom_call.1} parent=11 // pred_fallthru
          _
        // Predicated region
        $region29: #{tpu_custom_call.1} parent=11 // pred_check
          %p385 = pneg %p253
        $region30: #{tpu_custom_call.1} parent=11 // pred_check_branch
          %387 = sbr.rel (%p385) target = $region32
        $region31: #{tpu_custom_call.1} parent=11 // pred_region
          %s389 = ssub.s32 1024, 1024
          %390 = vsyncadd [#allocation9], %s389
          %s391 = sshll.u32 [#allocation8], 4
          %s392 = int_to_ptr.vmem [resolvable:$true] %s391
          %397 = dma.hbm_to_vmem [thread:$0]  %s10, 1024, %s392, [#allocation9], 64, 64, 4
        $region32: #{tpu_custom_call.1} parent=11 // pred_fallthru
          _
        // Predicated region
        $region33: #{tpu_custom_call.1} parent=11 // pred_check
          %p398 = pneg %p274
        $region34: #{tpu_custom_call.1} parent=11 // pred_check_branch
          %400 = sbr.rel (%p398) target = $region36
        $region35: #{tpu_custom_call.1} parent=11 // pred_region
          %s402 = ssub.s32 1024, 1024
          %403 = vsyncadd [#allocation12], %s402
          %s404 = sshll.u32 [#allocation11], 4
          %s405 = int_to_ptr.vmem [resolvable:$true] %s404
          %410 = dma.hbm_to_vmem [thread:$0]  %s11, 1024, %s405, [#allocation12], 64, 64, 4
        $region36: #{tpu_custom_call.1} parent=11 // pred_fallthru
          _
        // Predicated region
        $region37: #{tpu_custom_call.1} parent=11 // pred_check
          %p411 = pneg %p295
        $region38: #{tpu_custom_call.1} parent=11 // pred_check_branch
          %413 = sbr.rel (%p411) target = $region40
        $region39: #{tpu_custom_call.1} parent=11 // pred_region
          _
        $region40: #{tpu_custom_call.1} parent=11 // pred_fallthru
          _
        // Predicated region
        $region41: #{tpu_custom_call.1} parent=11 // pred_check
          %p414 = pneg %p316
        $region42: #{tpu_custom_call.1} parent=11 // pred_check_branch
          %416 = sbr.rel (%p414) target = $region44
        $region43: #{tpu_custom_call.1} parent=11 // pred_region
          %s418 = ssub.s32 1024, 1024
          %419 = vsyncadd [#allocation12], %s418
          %s420 = sshll.u32 [#allocation13], 4
          %s421 = int_to_ptr.vmem [resolvable:$true] %s420
          %426 = dma.hbm_to_vmem [thread:$0]  %s13, 1024, %s421, [#allocation12], 64, 64, 4
        $region44: #{tpu_custom_call.1} parent=11 // pred_fallthru
          _
        // Predicated region
        $region45: #{tpu_custom_call.1} parent=11 // pred_check
          %p427 = pneg %p337
        $region46: #{tpu_custom_call.1} parent=11 // pred_check_branch
          %429 = sbr.rel (%p427) target = $region48
        $region47: #{tpu_custom_call.1} parent=11 // pred_region
          _
        $region48: #{tpu_custom_call.1} parent=11 // pred_fallthru
          _
      $region12: #{tpu_custom_call.1} parent=5 // pred_fallthru
        _
      %p430 = scmp.lt.s32.totalorder %s30, 24
      // Predicated region
      $region49: #{tpu_custom_call.1} parent=5 // pred_check
        %p431 = pneg %p430
      $region50: #{tpu_custom_call.1} parent=5 // pred_check_branch
        %433 = sbr.rel (%p431) target = $region52
      $region51: #{tpu_custom_call.1} parent=5 // pred_region
        // Predicated region
        $region53: #{tpu_custom_call.1} parent=51 // pred_check
          %p434 = pneg %p64
        $region54: #{tpu_custom_call.1} parent=51 // pred_check_branch
          %436 = sbr.rel (%p434) target = $region56
        $region55: #{tpu_custom_call.1} parent=51 // pred_region
          %s437 = sand.u32 %s54, 1
          %s438 = sand.u32 %s54, 1
          %s439 = smul.addr %s438, 8
          %s440 = scalar_lea.vmem [#allocation7], %s439
          %s441 = smul.u32 2, %s37
          %s442 = smul.addr %s441, 2
          %s443 = sadd.s32 %s38, %s442
          %s444 = smul.addr %s443, 4
          %s445 = scalar_lea.vmem %s2, %s444
          // Predicated region
          $region57: #{tpu_custom_call.1} parent=55 // pred_check
            _
          $region58: #{tpu_custom_call.1} parent=55 // pred_check_branch
            %447 = sbr.rel (0) target = $region60
          $region59: #{tpu_custom_call.1} parent=55 // pred_region
            // Predicated region
            $region61: #{tpu_custom_call.1} parent=59 // pred_check
              _
            $region62: #{tpu_custom_call.1} parent=59 // pred_check_branch
              %449 = sbr.rel target = $region64
            $region63: #{tpu_custom_call.1} parent=59 // pred_region
              // Predicated region
              $region76: #{tpu_custom_call.1} parent=63 // pred_check
                _
              $region77: #{tpu_custom_call.1} parent=63 // pred_check_branch
                %467 = sbr.rel (0) target = $region79
              $region78: #{tpu_custom_call.1} parent=63 // pred_region
                loop: start=0, step=1, limit=1
                $region80: #{tpu_custom_call.1} parent=78 // loop_pre_header
                  _
                $region81: #{tpu_custom_call.1} parent=78 // loop_header
                  %s469 = sphi 0, %s473
                  %p470 = scmp.ge.s32.totalorder %s469, 1
                  %s474 = sphi %s445, %s445
                  %s475 = sphi %s440, %s440
                $region82: #{tpu_custom_call.1} parent=78 // loop_header_branch
                  %472 = sbr.rel (%p470) target = $region86
                $region83: #{tpu_custom_call.1} parent=78 // loop_body
                  _
                $region84: #{tpu_custom_call.1} parent=78 // loop_footer
                  %s473 = sadd.s32 1, %s469
                $region85: #{tpu_custom_call.1} parent=78 // loop_footer_branch
                  %468 = sbr.rel target = $region81
                $region86: #{tpu_custom_call.1} parent=78 // loop_exit
                  _
                %s477 = ssub.s32 16, 1
                loop: start=0, step=1, limit=1
                $region87: #{tpu_custom_call.1} parent=78 // loop_pre_header
                  _
                $region88: #{tpu_custom_call.1} parent=78 // loop_header
                  %s479 = sphi 0, %s483
                  %p480 = scmp.ge.s32.totalorder %s479, 1
                  %s484 = sphi %s445, %s445
                  %s485 = sphi %s440, %s440
                $region89: #{tpu_custom_call.1} parent=78 // loop_header_branch
                  %482 = sbr.rel (%p480) target = $region93
                $region90: #{tpu_custom_call.1} parent=78 // loop_body
                  %v486 = vld [vmem:[%s484] sm:%s477]
                  %487 = vst [vmem:[%s485] sm:%s477] %v486
                  %v488 = vld [vmem:[%s484 + $0x8] sm:%s477]
                  %489 = vst [vmem:[%s485 + $0x4] sm:%s477] %v488
                $region91: #{tpu_custom_call.1} parent=78 // loop_footer
                  %s483 = sadd.s32 1, %s479
                $region92: #{tpu_custom_call.1} parent=78 // loop_footer_branch
                  %478 = sbr.rel target = $region88
                $region93: #{tpu_custom_call.1} parent=78 // loop_exit
                  _
              $region79: #{tpu_custom_call.1} parent=63 // pred_fallthru
                _
            $region64: #{tpu_custom_call.1} parent=59 // pred_fallthru
              _
            // Predicated region
            $region65: #{tpu_custom_call.1} parent=59 // pred_check
              _
            $region66: #{tpu_custom_call.1} parent=59 // pred_check_branch
              %451 = sbr.rel (0) target = $region68
            $region67: #{tpu_custom_call.1} parent=59 // pred_region
              %s453 = ssub.s32 16, 1
              loop: start=0, step=1, limit=1
              $region69: #{tpu_custom_call.1} parent=67 // loop_pre_header
                _
              $region70: #{tpu_custom_call.1} parent=67 // loop_header
                %s455 = sphi 0, %s459
                %p456 = scmp.ge.s32.totalorder %s455, 1
                %s460 = sphi %s445, %s445
                %s461 = sphi %s440, %s440
              $region71: #{tpu_custom_call.1} parent=67 // loop_header_branch
                %458 = sbr.rel (%p456) target = $region75
              $region72: #{tpu_custom_call.1} parent=67 // loop_body
                %v462 = vld [vmem:[%s460] sm:%s453]
                %463 = vst [vmem:[%s461] sm:%s453] %v462
                %v464 = vld [vmem:[%s460 + $0x8] sm:%s453]
                %465 = vst [vmem:[%s461 + $0x4] sm:%s453] %v464
              $region73: #{tpu_custom_call.1} parent=67 // loop_footer
                %s459 = sadd.s32 1, %s455
              $region74: #{tpu_custom_call.1} parent=67 // loop_footer_branch
                %454 = sbr.rel target = $region70
              $region75: #{tpu_custom_call.1} parent=67 // loop_exit
                _
            $region68: #{tpu_custom_call.1} parent=59 // pred_fallthru
              _
          $region60: #{tpu_custom_call.1} parent=55 // pred_fallthru
            _
          %490 = vnop
        $region56: #{tpu_custom_call.1} parent=51 // pred_fallthru
          _
        // Predicated region
        $region94: #{tpu_custom_call.1} parent=51 // pred_check
          %p491 = pneg %p90
        $region95: #{tpu_custom_call.1} parent=51 // pred_check_branch
          %493 = sbr.rel (%p491) target = $region97
        $region96: #{tpu_custom_call.1} parent=51 // pred_region
          %s494 = smul.u32 16, %s38
          %p495 = scmp.lt.s32.totalorder %s494, 31
          %s496 = scalar_select %p495, %s494, 31
          %s497 = smul.addr %s496, 4
          %s498 = scalar_lea.vmem %s3, %s497
          %s499 = smul.u32 16, %s38
        $region97: #{tpu_custom_call.1} parent=51 // pred_fallthru
          _
        // Predicated region
        $region98: #{tpu_custom_call.1} parent=51 // pred_check
          %p500 = pneg %p116
        $region99: #{tpu_custom_call.1} parent=51 // pred_check_branch
          %502 = sbr.rel (%p500) target = $region101
        $region100: #{tpu_custom_call.1} parent=51 // pred_region
          %s503 = smul.u32 2, %s37
          %p504 = scmp.lt.s32.totalorder %s503, 23
          %s505 = scalar_select %p504, %s503, 23
          %s506 = smul.addr %s505, 8
          %s507 = scalar_lea.vmem %s4, %s506
          %s508 = smul.u32 2, %s37
        $region101: #{tpu_custom_call.1} parent=51 // pred_fallthru
          _
        // Predicated region
        $region102: #{tpu_custom_call.1} parent=51 // pred_check
          %p509 = pneg %p142
        $region103: #{tpu_custom_call.1} parent=51 // pred_check_branch
          %511 = sbr.rel (%p509) target = $region105
        $region104: #{tpu_custom_call.1} parent=51 // pred_region
          %s512 = smul.u32 2, %s37
          %p513 = scmp.lt.s32.totalorder %s512, 23
          %s514 = scalar_select %p513, %s512, 23
          %s515 = smul.addr %s514, 8
          %s516 = scalar_lea.vmem %s5, %s515
          %s517 = smul.u32 2, %s37
        $region105: #{tpu_custom_call.1} parent=51 // pred_fallthru
          _
      $region52: #{tpu_custom_call.1} parent=5 // pred_fallthru
        _
      %p518 = scmp.le.s32.totalorder 1, %s30
      %p519 = scmp.lt.s32.totalorder %s30, 25
      %p520 = pnand %p518, %p519
      %p521 = pneg %p520
      // Predicated region
      $region106: #{tpu_custom_call.1} parent=5 // pred_check
        _
      $region107: #{tpu_custom_call.1} parent=5 // pred_check_branch
        %523 = sbr.rel (%p520) target = $region109
      $region108: #{tpu_custom_call.1} parent=5 // pred_region
        %s524 = ssub.s32 %s30, 1
        %s525 = sand.u32 %s57, 1
        %s526 = sand.u32 %s57, 1
        %s527 = smul.addr %s526, 8
        %s528 = scalar_lea.vmem [#allocation7], %s527
        // Predicated region
        $region110: #{tpu_custom_call.1} parent=108 // pred_check
          %p529 = pneg %p70
        $region111: #{tpu_custom_call.1} parent=108 // pred_check_branch
          %531 = sbr.rel (%p529) target = $region113
        $region112: #{tpu_custom_call.1} parent=108 // pred_region
          _
        $region113: #{tpu_custom_call.1} parent=108 // pred_fallthru
          _
        // Predicated region
        $region114: #{tpu_custom_call.1} parent=108 // pred_check
          %p532 = pneg %p253
        $region115: #{tpu_custom_call.1} parent=108 // pred_check_branch
          %534 = sbr.rel (%p532) target = $region117
        $region116: #{tpu_custom_call.1} parent=108 // pred_region
          %535 = dma.done [#allocation9], 1024
        $region117: #{tpu_custom_call.1} parent=108 // pred_fallthru
          _
        // Predicated region
        $region118: #{tpu_custom_call.1} parent=108 // pred_check
          %p536 = pneg %p274
        $region119: #{tpu_custom_call.1} parent=108 // pred_check_branch
          %538 = sbr.rel (%p536) target = $region121
        $region120: #{tpu_custom_call.1} parent=108 // pred_region
          %539 = dma.done [#allocation12], 1024
        $region121: #{tpu_custom_call.1} parent=108 // pred_fallthru
          _
        // Predicated region
        $region122: #{tpu_custom_call.1} parent=108 // pred_check
          %p540 = pneg %p316
        $region123: #{tpu_custom_call.1} parent=108 // pred_check_branch
          %542 = sbr.rel (%p540) target = $region125
        $region124: #{tpu_custom_call.1} parent=108 // pred_region
          %543 = dma.done [#allocation12], 1024
        $region125: #{tpu_custom_call.1} parent=108 // pred_fallthru
          _
        %s544 = sand.u32 %s57, 1
        %s545 = sand.u32 %s57, 1
        %s546 = smul.addr %s545, 8
        %s547 = scalar_lea.vmem [#allocation7], %s546
        %p548 = pneg %p70
        %p549 = pneg %p67
        %s550 = smul.u32 16, %s40
        %p551 = scmp.lt.s32.totalorder %s550, 31
        %s552 = scalar_select %p551, %s550, 31
        %s553 = smul.addr %s552, 4
        %s554 = scalar_lea.vmem %s3, %s553
        %p555 = pneg %p96
        %p556 = pneg %p93
        %s557 = smul.u32 2, %s39
        %p558 = scmp.lt.s32.totalorder %s557, 23
        %s559 = scalar_select %p558, %s557, 23
        %s560 = smul.addr %s559, 8
        %s561 = scalar_lea.vmem %s4, %s560
        %p562 = pneg %p122
        %p563 = pneg %p119
        %s564 = smul.u32 2, %s39
        %p565 = scmp.lt.s32.totalorder %s564, 23
        %s566 = scalar_select %p565, %s564, 23
        %s567 = smul.addr %s566, 8
        %s568 = scalar_lea.vmem %s5, %s567
        %p569 = pneg %p148
        %p570 = pneg %p145
        %p571 = pneg %p169
        %p572 = pneg %p166
        %p573 = pneg %p190
        %p574 = pneg %p187
        %p575 = pneg %p211
        %p576 = pneg %p208
        %p577 = pneg %p232
        %p578 = pneg %p229
        %p579 = pneg %p253
        %p580 = pneg %p250
        %p581 = pneg %p274
        %p582 = pneg %p271
        %p583 = pneg %p295
        %p584 = pneg %p292
        %p585 = pneg %p316
        %p586 = pneg %p313
        %p587 = pneg %p337
        %p588 = pneg %p334
        %p589 = pneg %p358
        %p590 = pneg %p355
        %s591 = smul.u32 2, %s39
        %s592 = smul.u32 16, %s40
        %p593 = scmp.lt.s32.totalorder %s592, 31
        %s594 = scalar_select %p593, %s592, 31
        %s595 = smul.addr %s594, 4
        %s596 = scalar_lea.vmem %s3, %s595
        %s597 = smul.u32 16, %s40
        %s598 = smul.u32 2, %s39
        %p599 = scmp.lt.s32.totalorder %s598, 23
        %s600 = scalar_select %p599, %s598, 23
        %s601 = smul.addr %s600, 8
        %s602 = scalar_lea.vmem %s4, %s601
        %s603 = smul.u32 2, %s39
        %s604 = smul.u32 2, %s39
        %p605 = scmp.lt.s32.totalorder %s604, 23
        %s606 = scalar_select %p605, %s604, 23
        %s607 = smul.addr %s606, 8
        %s608 = scalar_lea.vmem %s5, %s607
        %s609 = smul.u32 2, %s39
        %p611 = scmp.eq.s32.totalorder %s39, 0
        %p612 = scmp.eq.s32.totalorder %s40, 0
        %p613 = pnand %p611, %p612
        %p614 = pneg %p613
        // Predicated region
        $region126: #{tpu_custom_call.1} parent=108 // pred_check
          _
        $region127: #{tpu_custom_call.1} parent=108 // pred_check_branch
          %616 = sbr.rel (%p613) target = $region129
        $region128: #{tpu_custom_call.1} parent=108 // pred_region
          %617 = vst [vmem:[#allocation3] sm:$0xff] -1e+30
        $region129: #{tpu_custom_call.1} parent=108 // pred_fallthru
          _
        // Predicated region
        $region130: #{tpu_custom_call.1} parent=108 // pred_check
          %p618 = pneg %p612
        $region131: #{tpu_custom_call.1} parent=108 // pred_check_branch
          %620 = sbr.rel (%p618) target = $region133
        $region132: #{tpu_custom_call.1} parent=108 // pred_region
          %621 = vst [vmem:[#allocation2] sm:$0xff] 0.0
          %622 = vst [vmem:[#allocation2 + $0x8] sm:$0xff] 0.0
        $region133: #{tpu_custom_call.1} parent=108 // pred_fallthru
          _
        %v623 = vld [vmem:[#allocation2] sm:$0xff]
        %v624 = vld [vmem:[#allocation2 + $0x8] sm:$0xff]
        %v625 = vld [vmem:[%s528] sm:$0xf]
        %v626 = vld [vmem:[%s528 + $0x4] sm:$0xf]
        %v627 = vld [vmem:[%s596] sm:$0xf]
        %v628 = vld [vmem:[%s596 + $0x4] sm:$0xf]
        %v629 = vld [vmem:[%s596 + $0x8] sm:$0xf]
        %v630 = vld [vmem:[%s596 + $0xc] sm:$0xf]
        %v631 = vld [vmem:[%s596 + $0x10] sm:$0xf]
        %v632 = vld [vmem:[%s596 + $0x14] sm:$0xf]
        %v633 = vld [vmem:[%s596 + $0x18] sm:$0xf]
        %v634 = vld [vmem:[%s596 + $0x1c] sm:$0xf]
        %v635 = vld [vmem:[%s596 + $0x20] sm:$0xf]
        %v636 = vld [vmem:[%s596 + $0x24] sm:$0xf]
        %v637 = vld [vmem:[%s596 + $0x28] sm:$0xf]
        %v638 = vld [vmem:[%s596 + $0x2c] sm:$0xf]
        %v639 = vld [vmem:[%s596 + $0x30] sm:$0xf]
        %v640 = vld [vmem:[%s596 + $0x34] sm:$0xf]
        %v641 = vld [vmem:[%s596 + $0x38] sm:$0xf]
        %v642 = vld [vmem:[%s596 + $0x3c] sm:$0xf]
        %v645 = vunpack.c.l.b16 %v625
        %v646 = vunpack.c.l.b16 %v626
        %v647 = vpack.c.b16 %v646, %v645
        %v665 = vunpack.c.l.b16 %v627
        %v666 = vunpack.c.l.b16 %v628
        %v667 = vunpack.c.l.b16 %v629
        %v668 = vunpack.c.l.b16 %v630
        %v669 = vunpack.c.l.b16 %v631
        %v670 = vunpack.c.l.b16 %v632
        %v671 = vunpack.c.l.b16 %v633
        %v672 = vunpack.c.l.b16 %v634
        %v673 = vunpack.c.l.b16 %v635
        %v674 = vunpack.c.l.b16 %v636
        %v675 = vunpack.c.l.b16 %v637
        %v676 = vunpack.c.l.b16 %v638
        %v677 = vunpack.c.l.b16 %v639
        %v678 = vunpack.c.l.b16 %v640
        %v679 = vunpack.c.l.b16 %v641
        %v680 = vunpack.c.l.b16 %v642
        %v681 = vpack.c.b16 %v666, %v665
        %v682 = vpack.c.b16 %v668, %v667
        %v683 = vpack.c.b16 %v670, %v669
        %v684 = vpack.c.b16 %v672, %v671
        %v685 = vpack.c.b16 %v674, %v673
        %v686 = vpack.c.b16 %v676, %v675
        %v687 = vpack.c.b16 %v678, %v677
        %v688 = vpack.c.b16 %v680, %v679
        %697 = vmatprep.subr.bf16.mxu0 0
        %698 = vmatpush1.bf16.msra.mxu0 %v688
        %699 = vmatprep.subr.bf16.mxu0 0
        %700 = vmatpush1.bf16.msra.mxu0 %v687
        %701 = vmatprep.subr.bf16.mxu0 0
        %702 = vmatpush1.bf16.msra.mxu0 %v686
        %703 = vmatprep.subr.bf16.mxu0 0
        %704 = vmatpush1.bf16.msra.mxu0 %v685
        %705 = vmatprep.subr.bf16.mxu0 0
        %706 = vmatpush1.bf16.msra.mxu0 %v684
        %707 = vmatprep.subr.bf16.mxu0 0
        %708 = vmatpush1.bf16.msra.mxu0 %v683
        %709 = vmatprep.subr.bf16.mxu0 0
        %710 = vmatpush1.bf16.msra.mxu0 %v682
        %711 = vmatprep.subr.bf16.mxu0 0
        %712 = vmatpush1.bf16.msra.mxu0 %v681
        %713 = vmatprep.subr.bf16.mxu0 0
        %714 = vmatpush2.bf16.msra.mxu0 0
        %715 = vmatprep.subr.bf16.mxu0 0
        %716 = vmatpush2.bf16.msra.mxu0 0
        %717 = vmatprep.subr.bf16.mxu0 0
        %718 = vmatpush2.bf16.msra.mxu0 0
        %719 = vmatprep.subr.bf16.mxu0 0
        %720 = vmatpush2.bf16.msra.mxu0 0
        %721 = vmatprep.subr.bf16.mxu0 0
        %722 = vmatpush2.bf16.msra.mxu0 0
        %723 = vmatprep.subr.bf16.mxu0 0
        %724 = vmatpush2.bf16.msra.mxu0 0
        %725 = vmatprep.subr.bf16.mxu0 0
        %726 = vmatpush2.bf16.msra.mxu0 0
        %727 = vmatprep.subr.bf16.mxu0 0
        %728 = vmatpush2.bf16.msra.mxu0 0
        %729 = vmatprep.mubr.bf16.mxu0 0
        %730 = vmatmul.mubr.bf16.gmra.mxu0 %v647
        %v731 = vpop.f32.mrf.mxu0
        %v732 = vadd.f32 0.0, %v731
        %v733 = vpop.f32.mrf.mxu0
        %v734 = vpop.f32.mrf.mxu0
        %v735 = vadd.f32 0.0, %v734
        %v736 = vpop.f32.mrf.mxu0
        %737 = vdwg.mxu0
        %v738 = vadd.f32 %v623, %v732
        %v739 = vadd.f32 %v624, %v735
        %740 = vst [vmem:[#allocation2] sm:$0xff] %v738
        %741 = vst [vmem:[#allocation2 + $0x8] sm:$0xff] %v739
        %p742 = scmp.eq.s32.totalorder %s40, 1
        // Predicated region
        $region134: #{tpu_custom_call.1} parent=108 // pred_check
          %p743 = pneg %p742
        $region135: #{tpu_custom_call.1} parent=108 // pred_check_branch
          %745 = sbr.rel (%p743) target = $region137
        $region136: #{tpu_custom_call.1} parent=108 // pred_region
          %v746 = vld [vmem:[%s602] sm:$0xff]
          %v747 = vld [vmem:[%s602 + $0x8] sm:$0xff]
          %v748 = vld [vmem:[#allocation2] sm:$0xff]
          %v749 = vld [vmem:[#allocation2 + $0x8] sm:$0xff]
          %751 = vset.pattern.permute.xlu0 0
          %752 = vperm.xlu0 %751, %v746
          %v753 = vpop.permute.xlu0 %752
          %756 = vset.pattern.permute.xlu0 0
          %757 = vperm.xlu0 %756, %v747
          %v758 = vpop.permute.xlu0 %757
          %v760 = vmul.f32 %v753, %v748
          %v761 = vmul.f32 %v758, %v749
          %v762 = vld [vmem:[%s7] sm:$0x1]
          %v764 = vlaneseq
          %v765 = vshrl.u32 %v764, 7
          %v766 = vsub.s32 0, %v765
          %v767 = vrot.slane %v762, %v766
          %v769 = vadd.f32 %v760, %v767
          %v770 = vadd.f32 %v761, %v767
          %v771 = vmax.f32 %v769, 0.0
          %v772 = vmax.f32 %v770, 0.0
          %v773 = vld [vmem:[%s608] sm:$0xff]
          %v774 = vld [vmem:[%s608 + $0x8] sm:$0xff]
          %v775 = vlaneseq
          %v776 = vshrl.u32 %v775, 7
          %s777 = sld [smem:[#allocation5 + %s39]]
          %s778 = sld [smem:[#allocation6 + %s39]]
          %s779 = sadd.s32 %s778, 1
          // While loop
          $region138: #{tpu_custom_call.1} parent=136 // loop_pre_header
            _
          $region139: #{tpu_custom_call.1} parent=136 // loop_header
            %s781 = sphi %s777, %s783
            %p782 = scmp.ge.s32.totalorder %s781, %s779
          $region140: #{tpu_custom_call.1} parent=136 // loop_header_branch
            %785 = sbr.rel (%p782) target = $region144
          $region141: #{tpu_custom_call.1} parent=136 // loop_body
            %v786 = vstv %s781
            %vm787 = vcmp.eq.s32.totalorder %v773, %v786
            %vm788 = vcmp.eq.s32.totalorder %v774, %v786
            %v789 = vsel %vm787, 1, 0
            %v790 = vsel %vm788, 1, 0
            %791 = vset.pattern.permute.xlu0 0
            %792 = vperm.xlu0 %791, %v789
            %v793 = vpop.permute.xlu0 %792
            %794 = vset.pattern.permute.xlu0 0
            %795 = vperm.xlu0 %794, %v790
            %v796 = vpop.permute.xlu0 %795
            %vm797 = vcmp.eq.s32.totalorder %v793, 1
            %vm798 = vcmp.eq.s32.totalorder %v796, 1
            %v799 = vsel %vm797, %v771, -1e+30
            %v800 = vsel %vm798, %v772, -1e+30
            %v801 = vmax.f32 %v799, %v800
            %v802 = vrot.slane %v801, 4
            %v803 = vmax.f32 %v801, %v802
            %v804 = vrot.slane %v803, 2
            %v805 = vmax.f32 %v803, %v804
            %v806 = vrot.slane %v805, 1
            %v807 = vmax.f32 %v805, %v806
            %v808 = vld [vmem:[#allocation3] sm:$0xff]
            %vm809 = vcmp.eq.s32.totalorder %v776, %v786
            %v810 = vsel %vm809, 1, 0
            %vm811 = vcmp.eq.s32.totalorder %v810, 1
            %v812 = vsel %vm811, %v807, -1e+30
            %v813 = vmax.f32 %v808, %v812
            %814 = vst [vmem:[#allocation3] sm:$0xff] %v813
          $region142: #{tpu_custom_call.1} parent=136 // loop_footer
            %s783 = sadd.s32 %s781, 1
          $region143: #{tpu_custom_call.1} parent=136 // loop_footer_branch
            %780 = sbr.rel target = $region139
          $region144: #{tpu_custom_call.1} parent=136 // loop_exit
            _
        $region137: #{tpu_custom_call.1} parent=108 // pred_fallthru
          _
        %p815 = scmp.eq.s32.totalorder %s39, 11
        %p816 = pnand %p815, %p742
        %p817 = pneg %p816
        // Predicated region
        $region145: #{tpu_custom_call.1} parent=108 // pred_check
          _
        $region146: #{tpu_custom_call.1} parent=108 // pred_check_branch
          %819 = sbr.rel (%p816) target = $region148
        $region147: #{tpu_custom_call.1} parent=108 // pred_region
          %v820 = vld [vmem:[#allocation3] sm:$0xff]
          %vm821 = vcmp.lt.f32.partialorder %v820, -1e+29
          %v822 = vsel %vm821, 0.0, %v820
          %v823 = vld [vmem:[%s6] sm:$0xf]
          %v824 = vld [vmem:[%s8] sm:$0xf]
          %v825 = vld [vmem:[%s8 + $0x4] sm:$0xf]
          %v826 = vld [vmem:[%s8 + $0x8] sm:$0xf]
          %v827 = vld [vmem:[%s8 + $0xc] sm:$0xf]
          %v828 = vld [vmem:[%s8 + $0x10] sm:$0xf]
          %v829 = vld [vmem:[%s8 + $0x14] sm:$0xf]
          %v830 = vld [vmem:[%s8 + $0x18] sm:$0xf]
          %v831 = vld [vmem:[%s8 + $0x1c] sm:$0xf]
          %v832 = vld [vmem:[%s8 + $0x20] sm:$0xf]
          %v833 = vld [vmem:[%s8 + $0x24] sm:$0xf]
          %v834 = vld [vmem:[%s8 + $0x28] sm:$0xf]
          %v835 = vld [vmem:[%s8 + $0x2c] sm:$0xf]
          %v836 = vld [vmem:[%s8 + $0x30] sm:$0xf]
          %v837 = vld [vmem:[%s8 + $0x34] sm:$0xf]
          %v838 = vld [vmem:[%s8 + $0x38] sm:$0xf]
          %v839 = vld [vmem:[%s8 + $0x3c] sm:$0xf]
          %v840 = vld [vmem:[%s9] sm:$0x1]
          %v842 = vlaneseq
          %v843 = vshrl.u32 %v842, 7
          %v844 = vsub.s32 0, %v843
          %v845 = vrot.slane %v840, %v844
          %v863 = vunpack.c.l.b16 %v824
          %v864 = vunpack.c.l.b16 %v825
          %v865 = vunpack.c.l.b16 %v826
          %v866 = vunpack.c.l.b16 %v827
          %v867 = vunpack.c.l.b16 %v828
          %v868 = vunpack.c.l.b16 %v829
          %v869 = vunpack.c.l.b16 %v830
          %v870 = vunpack.c.l.b16 %v831
          %v871 = vunpack.c.l.b16 %v832
          %v872 = vunpack.c.l.b16 %v833
          %v873 = vunpack.c.l.b16 %v834
          %v874 = vunpack.c.l.b16 %v835
          %v875 = vunpack.c.l.b16 %v836
          %v876 = vunpack.c.l.b16 %v837
          %v877 = vunpack.c.l.b16 %v838
          %v878 = vunpack.c.l.b16 %v839
          %v879 = vpack.c.b16 %v864, %v863
          %v880 = vpack.c.b16 %v866, %v865
          %v881 = vpack.c.b16 %v868, %v867
          %v882 = vpack.c.b16 %v870, %v869
          %v883 = vpack.c.b16 %v872, %v871
          %v884 = vpack.c.b16 %v874, %v873
          %v885 = vpack.c.b16 %v876, %v875
          %v886 = vpack.c.b16 %v878, %v877
          %895 = vmatprep.subr.bf16.mxu0 0
          %896 = vmatpush1.bf16.msra.mxu0 %v886
          %897 = vmatprep.subr.bf16.mxu0 0
          %898 = vmatpush1.bf16.msra.mxu0 %v885
          %899 = vmatprep.subr.bf16.mxu0 0
          %900 = vmatpush1.bf16.msra.mxu0 %v884
          %901 = vmatprep.subr.bf16.mxu0 0
          %902 = vmatpush1.bf16.msra.mxu0 %v883
          %903 = vmatprep.subr.bf16.mxu0 0
          %904 = vmatpush1.bf16.msra.mxu0 %v882
          %905 = vmatprep.subr.bf16.mxu0 0
          %906 = vmatpush1.bf16.msra.mxu0 %v881
          %907 = vmatprep.subr.bf16.mxu0 0
          %908 = vmatpush1.bf16.msra.mxu0 %v880
          %909 = vmatprep.subr.bf16.mxu0 0
          %910 = vmatpush1.bf16.msra.mxu0 %v879
          %911 = vmatprep.subr.bf16.mxu0 0
          %912 = vmatpush2.bf16.msra.mxu0 0
          %913 = vmatprep.subr.bf16.mxu0 0
          %914 = vmatpush2.bf16.msra.mxu0 0
          %915 = vmatprep.subr.bf16.mxu0 0
          %916 = vmatpush2.bf16.msra.mxu0 0
          %917 = vmatprep.subr.bf16.mxu0 0
          %918 = vmatpush2.bf16.msra.mxu0 0
          %919 = vmatprep.subr.bf16.mxu0 0
          %920 = vmatpush2.bf16.msra.mxu0 0
          %921 = vmatprep.subr.bf16.mxu0 0
          %922 = vmatpush2.bf16.msra.mxu0 0
          %923 = vmatprep.subr.bf16.mxu0 0
          %924 = vmatpush2.bf16.msra.mxu0 0
          %925 = vmatprep.subr.bf16.mxu0 0
          %926 = vmatpush2.bf16.msra.mxu0 0
          %927 = vmatprep.mubr.bf16.mxu0 0
          %928 = vmatmul.mubr.bf16.gmra.mxu0 %v823
          %v929 = vpop.f32.mrf.mxu0
          %v930 = vadd.f32 %v845, %v929
          %v931 = vpop.f32.mrf.mxu0
          %v932 = vpop.f32.mrf.mxu0
          %v933 = vpop.f32.mrf.mxu0
          %934 = vdwg.mxu0
          %v935 = vmax.f32 %v930, 0.0
          %v936 = vpack.c.bf16 %v822, %v822
          %v937 = vld [vmem:[#allocation8] sm:$0xf]
          %v938 = vld [vmem:[#allocation8 + $0x4] sm:$0xf]
          %v939 = vld [vmem:[#allocation8 + $0x8] sm:$0xf]
          %v940 = vld [vmem:[#allocation8 + $0xc] sm:$0xf]
          %v941 = vld [vmem:[#allocation8 + $0x10] sm:$0xf]
          %v942 = vld [vmem:[#allocation8 + $0x14] sm:$0xf]
          %v943 = vld [vmem:[#allocation8 + $0x18] sm:$0xf]
          %v944 = vld [vmem:[#allocation8 + $0x1c] sm:$0xf]
          %v945 = vld [vmem:[#allocation8 + $0x20] sm:$0xf]
          %v946 = vld [vmem:[#allocation8 + $0x24] sm:$0xf]
          %v947 = vld [vmem:[#allocation8 + $0x28] sm:$0xf]
          %v948 = vld [vmem:[#allocation8 + $0x2c] sm:$0xf]
          %v949 = vld [vmem:[#allocation8 + $0x30] sm:$0xf]
          %v950 = vld [vmem:[#allocation8 + $0x34] sm:$0xf]
          %v951 = vld [vmem:[#allocation8 + $0x38] sm:$0xf]
          %v952 = vld [vmem:[#allocation8 + $0x3c] sm:$0xf]
          %v953 = vpack.c.bf16 %v935, %v935
          %v954 = vld [vmem:[#allocation11] sm:$0xf]
          %v955 = vld [vmem:[#allocation11 + $0x4] sm:$0xf]
          %v956 = vld [vmem:[#allocation11 + $0x8] sm:$0xf]
          %v957 = vld [vmem:[#allocation11 + $0xc] sm:$0xf]
          %v958 = vld [vmem:[#allocation11 + $0x10] sm:$0xf]
          %v959 = vld [vmem:[#allocation11 + $0x14] sm:$0xf]
          %v960 = vld [vmem:[#allocation11 + $0x18] sm:$0xf]
          %v961 = vld [vmem:[#allocation11 + $0x1c] sm:$0xf]
          %v962 = vld [vmem:[#allocation11 + $0x20] sm:$0xf]
          %v963 = vld [vmem:[#allocation11 + $0x24] sm:$0xf]
          %v964 = vld [vmem:[#allocation11 + $0x28] sm:$0xf]
          %v965 = vld [vmem:[#allocation11 + $0x2c] sm:$0xf]
          %v966 = vld [vmem:[#allocation11 + $0x30] sm:$0xf]
          %v967 = vld [vmem:[#allocation11 + $0x34] sm:$0xf]
          %v968 = vld [vmem:[#allocation11 + $0x38] sm:$0xf]
          %v969 = vld [vmem:[#allocation11 + $0x3c] sm:$0xf]
          %v986 = vunpack.c.l.b16 %v954
          %v987 = vunpack.c.l.b16 %v955
          %v988 = vunpack.c.l.b16 %v956
          %v989 = vunpack.c.l.b16 %v957
          %v990 = vunpack.c.l.b16 %v958
          %v991 = vunpack.c.l.b16 %v959
          %v992 = vunpack.c.l.b16 %v960
          %v993 = vunpack.c.l.b16 %v961
          %v994 = vunpack.c.l.b16 %v962
          %v995 = vunpack.c.l.b16 %v963
          %v996 = vunpack.c.l.b16 %v964
          %v997 = vunpack.c.l.b16 %v965
          %v998 = vunpack.c.l.b16 %v966
          %v999 = vunpack.c.l.b16 %v967
          %v1000 = vunpack.c.l.b16 %v968
          %v1001 = vunpack.c.l.b16 %v969
          %v1002 = vpack.c.b16 %v987, %v986
          %v1003 = vpack.c.b16 %v989, %v988
          %v1004 = vpack.c.b16 %v991, %v990
          %v1005 = vpack.c.b16 %v993, %v992
          %v1006 = vpack.c.b16 %v995, %v994
          %v1007 = vpack.c.b16 %v997, %v996
          %v1008 = vpack.c.b16 %v999, %v998
          %v1009 = vpack.c.b16 %v1001, %v1000
          %1018 = vmatprep.subr.bf16.mxu0 0
          %1019 = vmatpush1.bf16.msra.mxu0 %v1009
          %1020 = vmatprep.subr.bf16.mxu0 0
          %1021 = vmatpush1.bf16.msra.mxu0 %v1008
          %1022 = vmatprep.subr.bf16.mxu0 0
          %1023 = vmatpush1.bf16.msra.mxu0 %v1007
          %1024 = vmatprep.subr.bf16.mxu0 0
          %1025 = vmatpush1.bf16.msra.mxu0 %v1006
          %1026 = vmatprep.subr.bf16.mxu0 0
          %1027 = vmatpush1.bf16.msra.mxu0 %v1005
          %1028 = vmatprep.subr.bf16.mxu0 0
          %1029 = vmatpush1.bf16.msra.mxu0 %v1004
          %1030 = vmatprep.subr.bf16.mxu0 0
          %1031 = vmatpush1.bf16.msra.mxu0 %v1003
          %1032 = vmatprep.subr.bf16.mxu0 0
          %1033 = vmatpush1.bf16.msra.mxu0 %v1002
          %1034 = vmatprep.subr.bf16.mxu0 0
          %1035 = vmatpush2.bf16.msra.mxu0 0
          %1036 = vmatprep.subr.bf16.mxu0 0
          %1037 = vmatpush2.bf16.msra.mxu0 0
          %1038 = vmatprep.subr.bf16.mxu0 0
          %1039 = vmatpush2.bf16.msra.mxu0 0
          %1040 = vmatprep.subr.bf16.mxu0 0
          %1041 = vmatpush2.bf16.msra.mxu0 0
          %1042 = vmatprep.subr.bf16.mxu0 0
          %1043 = vmatpush2.bf16.msra.mxu0 0
          %1044 = vmatprep.subr.bf16.mxu0 0
          %1045 = vmatpush2.bf16.msra.mxu0 0
          %1046 = vmatprep.subr.bf16.mxu0 0
          %1047 = vmatpush2.bf16.msra.mxu0 0
          %1048 = vmatprep.subr.bf16.mxu0 0
          %1049 = vmatpush2.bf16.msra.mxu0 0
          %1050 = vmatprep.mubr.bf16.mxu0 0
          %1051 = vmatmul.mubr.bf16.gmra.mxu0 %v953
          %v1052 = vpop.f32.mrf.mxu0
          %v1053 = vadd.f32 0.0, %v1052
          %v1054 = vpop.f32.mrf.mxu0
          %v1055 = vpop.f32.mrf.mxu0
          %v1056 = vpop.f32.mrf.mxu0
          %1057 = vdwg.mxu0
          %v1074 = vunpack.c.l.b16 %v937
          %v1075 = vunpack.c.l.b16 %v938
          %v1076 = vunpack.c.l.b16 %v939
          %v1077 = vunpack.c.l.b16 %v940
          %v1078 = vunpack.c.l.b16 %v941
          %v1079 = vunpack.c.l.b16 %v942
          %v1080 = vunpack.c.l.b16 %v943
          %v1081 = vunpack.c.l.b16 %v944
          %v1082 = vunpack.c.l.b16 %v945
          %v1083 = vunpack.c.l.b16 %v946
          %v1084 = vunpack.c.l.b16 %v947
          %v1085 = vunpack.c.l.b16 %v948
          %v1086 = vunpack.c.l.b16 %v949
          %v1087 = vunpack.c.l.b16 %v950
          %v1088 = vunpack.c.l.b16 %v951
          %v1089 = vunpack.c.l.b16 %v952
          %v1090 = vpack.c.b16 %v1075, %v1074
          %v1091 = vpack.c.b16 %v1077, %v1076
          %v1092 = vpack.c.b16 %v1079, %v1078
          %v1093 = vpack.c.b16 %v1081, %v1080
          %v1094 = vpack.c.b16 %v1083, %v1082
          %v1095 = vpack.c.b16 %v1085, %v1084
          %v1096 = vpack.c.b16 %v1087, %v1086
          %v1097 = vpack.c.b16 %v1089, %v1088
          %1106 = vmatprep.subr.bf16.mxu0 0
          %1107 = vmatpush1.bf16.msra.mxu0 %v1097
          %1108 = vmatprep.subr.bf16.mxu0 0
          %1109 = vmatpush1.bf16.msra.mxu0 %v1096
          %1110 = vmatprep.subr.bf16.mxu0 0
          %1111 = vmatpush1.bf16.msra.mxu0 %v1095
          %1112 = vmatprep.subr.bf16.mxu0 0
          %1113 = vmatpush1.bf16.msra.mxu0 %v1094
          %1114 = vmatprep.subr.bf16.mxu0 0
          %1115 = vmatpush1.bf16.msra.mxu0 %v1093
          %1116 = vmatprep.subr.bf16.mxu0 0
          %1117 = vmatpush1.bf16.msra.mxu0 %v1092
          %1118 = vmatprep.subr.bf16.mxu0 0
          %1119 = vmatpush1.bf16.msra.mxu0 %v1091
          %1120 = vmatprep.subr.bf16.mxu0 0
          %1121 = vmatpush1.bf16.msra.mxu0 %v1090
          %1122 = vmatprep.subr.bf16.mxu0 0
          %1123 = vmatpush2.bf16.msra.mxu0 0
          %1124 = vmatprep.subr.bf16.mxu0 0
          %1125 = vmatpush2.bf16.msra.mxu0 0
          %1126 = vmatprep.subr.bf16.mxu0 0
          %1127 = vmatpush2.bf16.msra.mxu0 0
          %1128 = vmatprep.subr.bf16.mxu0 0
          %1129 = vmatpush2.bf16.msra.mxu0 0
          %1130 = vmatprep.subr.bf16.mxu0 0
          %1131 = vmatpush2.bf16.msra.mxu0 0
          %1132 = vmatprep.subr.bf16.mxu0 0
          %1133 = vmatpush2.bf16.msra.mxu0 0
          %1134 = vmatprep.subr.bf16.mxu0 0
          %1135 = vmatpush2.bf16.msra.mxu0 0
          %1136 = vmatprep.subr.bf16.mxu0 0
          %1137 = vmatpush2.bf16.msra.mxu0 0
          %1138 = vmatprep.mubr.bf16.mxu0 0
          %1139 = vmatmul.mubr.bf16.gmra.mxu0 %v936
          %v1140 = vpop.f32.mrf.mxu0
          %v1141 = vadd.f32 %v1053, %v1140
          %v1142 = vpop.f32.mrf.mxu0
          %v1143 = vpop.f32.mrf.mxu0
          %v1144 = vpop.f32.mrf.mxu0
          %1145 = vdwg.mxu0
          %v1146 = vld [vmem:[%s12] sm:$0x1]
          %v1148 = vlaneseq
          %v1149 = vshrl.u32 %v1148, 7
          %v1150 = vsub.s32 0, %v1149
          %v1151 = vrot.slane %v1146, %v1150
          %v1153 = vadd.f32 %v1141, %v1151
          %v1154 = vmax.f32 %v1153, 0.0
          %v1155 = vpack.c.bf16 %v1154, %v1154
          %v1156 = vld [vmem:[#allocation13] sm:$0xf]
          %v1157 = vld [vmem:[#allocation13 + $0x4] sm:$0xf]
          %v1158 = vld [vmem:[#allocation13 + $0x8] sm:$0xf]
          %v1159 = vld [vmem:[#allocation13 + $0xc] sm:$0xf]
          %v1160 = vld [vmem:[#allocation13 + $0x10] sm:$0xf]
          %v1161 = vld [vmem:[#allocation13 + $0x14] sm:$0xf]
          %v1162 = vld [vmem:[#allocation13 + $0x18] sm:$0xf]
          %v1163 = vld [vmem:[#allocation13 + $0x1c] sm:$0xf]
          %v1164 = vld [vmem:[#allocation13 + $0x20] sm:$0xf]
          %v1165 = vld [vmem:[#allocation13 + $0x24] sm:$0xf]
          %v1166 = vld [vmem:[#allocation13 + $0x28] sm:$0xf]
          %v1167 = vld [vmem:[#allocation13 + $0x2c] sm:$0xf]
          %v1168 = vld [vmem:[#allocation13 + $0x30] sm:$0xf]
          %v1169 = vld [vmem:[#allocation13 + $0x34] sm:$0xf]
          %v1170 = vld [vmem:[#allocation13 + $0x38] sm:$0xf]
          %v1171 = vld [vmem:[#allocation13 + $0x3c] sm:$0xf]
          %v1172 = vld [vmem:[%s14] sm:$0x1]
          %v1174 = vlaneseq
          %v1175 = vshrl.u32 %v1174, 7
          %v1176 = vsub.s32 0, %v1175
          %v1177 = vrot.slane %v1172, %v1176
          %v1195 = vunpack.c.l.b16 %v1156
          %v1196 = vunpack.c.l.b16 %v1157
          %v1197 = vunpack.c.l.b16 %v1158
          %v1198 = vunpack.c.l.b16 %v1159
          %v1199 = vunpack.c.l.b16 %v1160
          %v1200 = vunpack.c.l.b16 %v1161
          %v1201 = vunpack.c.l.b16 %v1162
          %v1202 = vunpack.c.l.b16 %v1163
          %v1203 = vunpack.c.l.b16 %v1164
          %v1204 = vunpack.c.l.b16 %v1165
          %v1205 = vunpack.c.l.b16 %v1166
          %v1206 = vunpack.c.l.b16 %v1167
          %v1207 = vunpack.c.l.b16 %v1168
          %v1208 = vunpack.c.l.b16 %v1169
          %v1209 = vunpack.c.l.b16 %v1170
          %v1210 = vunpack.c.l.b16 %v1171
          %v1211 = vpack.c.b16 %v1196, %v1195
          %v1212 = vpack.c.b16 %v1198, %v1197
          %v1213 = vpack.c.b16 %v1200, %v1199
          %v1214 = vpack.c.b16 %v1202, %v1201
          %v1215 = vpack.c.b16 %v1204, %v1203
          %v1216 = vpack.c.b16 %v1206, %v1205
          %v1217 = vpack.c.b16 %v1208, %v1207
          %v1218 = vpack.c.b16 %v1210, %v1209
          %1227 = vmatprep.subr.bf16.mxu0 0
          %1228 = vmatpush1.bf16.msra.mxu0 %v1218
          %1229 = vmatprep.subr.bf16.mxu0 0
          %1230 = vmatpush1.bf16.msra.mxu0 %v1217
          %1231 = vmatprep.subr.bf16.mxu0 0
          %1232 = vmatpush1.bf16.msra.mxu0 %v1216
          %1233 = vmatprep.subr.bf16.mxu0 0
          %1234 = vmatpush1.bf16.msra.mxu0 %v1215
          %1235 = vmatprep.subr.bf16.mxu0 0
          %1236 = vmatpush1.bf16.msra.mxu0 %v1214
          %1237 = vmatprep.subr.bf16.mxu0 0
          %1238 = vmatpush1.bf16.msra.mxu0 %v1213
          %1239 = vmatprep.subr.bf16.mxu0 0
          %1240 = vmatpush1.bf16.msra.mxu0 %v1212
          %1241 = vmatprep.subr.bf16.mxu0 0
          %1242 = vmatpush1.bf16.msra.mxu0 %v1211
          %1243 = vmatprep.subr.bf16.mxu0 0
          %1244 = vmatpush2.bf16.msra.mxu0 0
          %1245 = vmatprep.subr.bf16.mxu0 0
          %1246 = vmatpush2.bf16.msra.mxu0 0
          %1247 = vmatprep.subr.bf16.mxu0 0
          %1248 = vmatpush2.bf16.msra.mxu0 0
          %1249 = vmatprep.subr.bf16.mxu0 0
          %1250 = vmatpush2.bf16.msra.mxu0 0
          %1251 = vmatprep.subr.bf16.mxu0 0
          %1252 = vmatpush2.bf16.msra.mxu0 0
          %1253 = vmatprep.subr.bf16.mxu0 0
          %1254 = vmatpush2.bf16.msra.mxu0 0
          %1255 = vmatprep.subr.bf16.mxu0 0
          %1256 = vmatpush2.bf16.msra.mxu0 0
          %1257 = vmatprep.subr.bf16.mxu0 0
          %1258 = vmatpush2.bf16.msra.mxu0 0
          %1259 = vmatprep.mubr.bf16.mxu0 0
          %1260 = vmatmul.mubr.bf16.gmra.mxu0 %v1155
          %v1261 = vpop.f32.mrf.mxu0
          %v1262 = vadd.f32 %v1177, %v1261
          %v1263 = vpop.f32.mrf.mxu0
          %v1264 = vpop.f32.mrf.mxu0
          %v1265 = vpop.f32.mrf.mxu0
          %1266 = vdwg.mxu0
          %1267 = vmax.xlane.f32.xlu0 %v1262
          %v1268 = vpop.xlane.xlu0 %1267
          %v1269 = vsub.f32 %v1262, %v1268
          %v1270 = vmul.f32 %v1269, 1.442695
          %v1271 = vpow.pop %v1270
          %1272 = vadd.xlane.f32.xlu0 %v1271
          %v1273 = vpop.xlane.xlu0 %1272
          %v1274 = vlog2.pop %v1273
          %v1275 = vmul.f32 %v1274, 0.6931472
          %v1276 = vadd.f32 %v1268, %v1275
          %v1277 = vsub.f32 %v1262, %v1276
          %1278 = vst [vmem:[#allocation14] sm:$0xff] %v1277
        $region148: #{tpu_custom_call.1} parent=108 // pred_fallthru
          _
        // Predicated region
        $region149: #{tpu_custom_call.1} parent=108 // pred_check
          %p1279 = pneg %p355
        $region150: #{tpu_custom_call.1} parent=108 // pred_check_branch
          %1281 = sbr.rel (%p1279) target = $region152
        $region151: #{tpu_custom_call.1} parent=108 // pred_region
          %s1283 = ssub.s32 128, 128
          %1284 = vsyncadd [#allocation10], %s1283
          %s1286 = sshll.u32 [#allocation14], 4
          %s1287 = int_to_ptr.vmem [resolvable:$true] %s1286
          %1289 = dma.vmem_to_hbm [thread:$0]  %s1287, 128, %s15, [#allocation10]
        $region152: #{tpu_custom_call.1} parent=108 // pred_fallthru
          _
        // Predicated region
        $region153: #{tpu_custom_call.1} parent=108 // pred_check
          %p1290 = pneg %p355
        $region154: #{tpu_custom_call.1} parent=108 // pred_check_branch
          %1292 = sbr.rel (%p1290) target = $region156
        $region155: #{tpu_custom_call.1} parent=108 // pred_region
          %1293 = dma.done [#allocation10], 128
        $region156: #{tpu_custom_call.1} parent=108 // pred_fallthru
          _
      $region109: #{tpu_custom_call.1} parent=5 // pred_fallthru
        _
      %p1294 = scmp.le.s32.totalorder 2, %s30
      // Predicated region
      $region157: #{tpu_custom_call.1} parent=5 // pred_check
        %p1295 = pneg %p1294
      $region158: #{tpu_custom_call.1} parent=5 // pred_check_branch
        %1297 = sbr.rel (%p1295) target = $region160
      $region159: #{tpu_custom_call.1} parent=5 // pred_region
        %s1298 = ssub.s32 %s30, 2
      $region160: #{tpu_custom_call.1} parent=5 // pred_fallthru
        _
    $region6: #{tpu_custom_call.1} parent=1 // loop_footer
      %s34 = sadd.s32 1, %s30
    $region7: #{tpu_custom_call.1} parent=1 // loop_footer_branch
      %29 = sbr.rel target = $region3
    $region8: #{tpu_custom_call.1} parent=1 // loop_exit
      _
    %1299 = vsyncpa [#allocation9], 1
    %s1300 = scalar_lea.sflag [#allocation9], 1
    %1301 = vsyncpa %s1300, 1
    %1302 = vsyncpa [#allocation12], 1
    %1303 = vsyncpa [#allocation10], 1
    %s1304 = scalar_lea.sflag [#allocation10], 1
    %1305 = vsyncpa %s1304, 1

</llo_original>
